<compile_context>
chip_gen: v7x
topology: tpu7x:2x2x1
jax: 0.10.0
libtpu: 0.0.40
codegen_flags: <defaults>
</compile_context>

<pallas_src>
import functools

import jax
import jax.numpy as jnp
from jax import lax
from jax.experimental import pallas as pl
from jax.experimental.pallas import tpu as pltpu

EPS = 1e-5
TK = 128  # K-reduction tile (lane-aligned)


# ----------------------------------------------------------------------------
# Fused conv (im2col matmul) + BatchNorm + (optional residual) + ReLU kernel
# ----------------------------------------------------------------------------
def _conv_bn_act_kernel(has_residual, *refs):
    """grid=(K//TK,): acc += patches_tile @ weight_tile (bf16 -> f32 acc);
    last K step applies training-mode BatchNorm (+ residual) + ReLU on the
    VMEM-resident accumulator and stores the result."""
    if has_residual:
        p_ref, w_ref, res_ref, gamma_ref, beta_ref, o_ref, acc_ref = refs
    else:
        p_ref, w_ref, gamma_ref, beta_ref, o_ref, acc_ref = refs
        res_ref = None

    k = pl.program_id(0)

    @pl.when(k == 0)
    def _init():
        acc_ref[...] = jnp.zeros_like(acc_ref)

    acc_ref[...] += jnp.dot(p_ref[...], w_ref[...],
                            preferred_element_type=jnp.float32)

    @pl.when(k == pl.num_programs(0) - 1)
    def _finalize():
        x = acc_ref[...]
        mean = jnp.mean(x, axis=0, keepdims=True)
        d = x - mean
        var = jnp.maximum(jnp.mean(d * d, axis=0, keepdims=True), 0.0)
        y = gamma_ref[...] * d * lax.rsqrt(var + EPS) + beta_ref[...]
        if res_ref is not None:
            y = y + res_ref[...]
        o_ref[...] = jnp.maximum(y, 0.0)


def fused_conv_bn_act(patches, weight, gamma, beta, residual=None):
    """relu(BN(patches @ weight) [+ residual]).

    patches: (M, K) im2col slab (cast to bf16); weight: (K, Cout) (bf16);
    residual: optional (M, Cout) f32.  BN is training-mode over the M axis,
    so M stays un-tiled (whole rows needed for batch stats); the grid axis is
    the K reduction.
    """
    M, K = patches.shape
    Kw, Cout = weight.shape
    assert K == Kw
    KP = pl.cdiv(K, TK) * TK
    if KP != K:  # zero-pad K to a lane/sublane-aligned multiple (numerically inert)
        patches = jnp.pad(patches, ((0, 0), (0, KP - K)))
        weight = jnp.pad(weight, ((0, KP - K), (0, 0)))
    patches = patches.astype(jnp.bfloat16)
    weight = weight.astype(jnp.bfloat16)
    nk = KP // TK

    in_specs = [
        pl.BlockSpec((M, TK), lambda k: (0, k)),      # im2col slab, K-tiled
        pl.BlockSpec((TK, Cout), lambda k: (k, 0)),   # weights, K-tiled
    ]
    args = [patches, weight]
    if residual is not None:
        in_specs.append(pl.BlockSpec((M, Cout), lambda k: (0, 0)))
        args.append(residual.astype(jnp.float32))
    in_specs += [pl.BlockSpec((1, Cout), lambda k: (0, 0)),
                 pl.BlockSpec((1, Cout), lambda k: (0, 0))]
    args += [gamma.reshape(1, Cout).astype(jnp.float32),
             beta.reshape(1, Cout).astype(jnp.float32)]

    return pl.pallas_call(
        functools.partial(_conv_bn_act_kernel, residual is not None),
        out_shape=jax.ShapeDtypeStruct((M, Cout), jnp.float32),
        grid_spec=pltpu.PrefetchScalarGridSpec(
            num_scalar_prefetch=0,
            grid=(nk,),
            in_specs=in_specs,
            out_specs=pl.BlockSpec((M, Cout), lambda k: (0, 0)),
            scratch_shapes=[pltpu.VMEM((M, Cout), jnp.float32)]),
        compiler_params=pltpu.CompilerParams(
            dimension_semantics=("arbitrary",),          # K is a reduction axis
            vmem_limit_bytes=32 * 1024 * 1024),
    )(*args)


# ----------------------------------------------------------------------------
# Fused AdaptiveAvgPool2d(1) + Linear + BatchNorm1d head kernel
# ----------------------------------------------------------------------------
def _pool_head_kernel(pool_ref, y_ref, w_ref, b_ref, gamma_ref, beta_ref, o_ref):
    # global average pool as an MXU matmul with a (B, B*HW) 1/HW block matrix
    feat = jnp.dot(pool_ref[...], y_ref[...], preferred_element_type=jnp.float32)
    # Linear(in_features, latent_dim), bf16 operands / f32 accumulation
    z = jnp.dot(feat.astype(jnp.bfloat16), w_ref[...],
                preferred_element_type=jnp.float32) + b_ref[...]
    # training-mode BatchNorm1d over the batch axis
    mean = jnp.mean(z, axis=0, keepdims=True)
    d = z - mean
    var = jnp.maximum(jnp.mean(d * d, axis=0, keepdims=True), 0.0)
    o_ref[...] = gamma_ref[...] * d * lax.rsqrt(var + EPS) + beta_ref[...]


def pallas_pool_head(y, fc_w, fc_b, gamma, beta):
    """y: (N, H, W, C) post-block activations -> (N, latent_dim)."""
    N, H, W, C = y.shape
    HW = H * W
    L = fc_w.shape[1]
    y_flat = y.reshape(N * HW, C)
    pool_mat = jnp.repeat(jnp.eye(N, dtype=jnp.float32), HW, axis=1) / HW  # (N, N*HW)
    return pl.pallas_call(
        _pool_head_kernel,
        out_shape=jax.ShapeDtypeStruct((N, L), jnp.float32),
    )(pool_mat, y_flat, fc_w.astype(jnp.bfloat16),
      fc_b.reshape(1, L), gamma.reshape(1, L), beta.reshape(1, L))


# ----------------------------------------------------------------------------
# JAX glue: im2col (layout plumbing), maxpool, parameter init, forward
# ----------------------------------------------------------------------------
def im2col(x, kh, kw, stride, pad):
    """x: (N,H,W,C) -> patches (N*Ho*Wo, kh*kw*C), (i*kw+j, c) minor ordering."""
    # TODO(synk): for large inputs the patch gather should be folded into the
    # conv kernel (tap-indexed BlockSpecs / manual DMA) instead of HBM slab.
    N, H, W, C = x.shape
    xp = jnp.pad(x, ((0, 0), (pad, pad), (pad, pad), (0, 0)))
    Ho = (H + 2 * pad - kh) // stride + 1
    Wo = (W + 2 * pad - kw) // stride + 1
    cols = []
    for i in range(kh):
        for j in range(kw):
            cols.append(xp[:, i:i + stride * Ho:stride, j:j + stride * Wo:stride, :])
    patches = jnp.stack(cols, axis=3)                     # (N,Ho,Wo,kh*kw,C)
    return patches.reshape(N * Ho * Wo, kh * kw * C), (N, Ho, Wo)


def conv_bn_act(x, w, gamma, beta, *, stride, pad, residual=None):
    """x: (N,H,W,Cin); w: (kh,kw,Cin,Cout).  Fused conv + BN + ReLU(+residual)."""
    kh, kw, cin, cout = w.shape
    # cast before im2col so the materialized patch slab is half the HBM bytes
    patches, (N, Ho, Wo) = im2col(x.astype(jnp.bfloat16), kh, kw, stride, pad)
    res_flat = None if residual is None else residual.reshape(N * Ho * Wo, cout)
    out = fused_conv_bn_act(patches, w.reshape(kh * kw * cin, cout),
                            gamma, beta, residual=res_flat)
    return out.reshape(N, Ho, Wo, cout)


def maxpool2d(x, k=3, stride=2, pad=1):
    # TODO(synk): stride-2 window max kept as lax.reduce_window glue (strided
    # sublane window gather has no clean Pallas expression at this size).
    return lax.reduce_window(
        x, jnp.array(-jnp.inf, x.dtype), lax.max,
        window_dimensions=(1, k, k, 1),
        window_strides=(1, stride, stride, 1),
        padding=((0, 0), (pad, pad), (pad, pad), (0, 0)))


def init_params(key, in_channels, latent_dim, width=64):
    ks = jax.random.split(key, 8)
    scale = 0.05
    return {
        # stem conv: 7x7 / stride 2 / pad 3 / no bias (kh,kw,Cin,Cout layout)
        "conv1_w": scale * jax.random.normal(ks[0], (7, 7, in_channels, width), jnp.float32),
        "bn1_g": jnp.ones((width,), jnp.float32),
        "bn1_b": jnp.zeros((width,), jnp.float32),
        # BasicBlock (64 -> 64), two 3x3 convs
        "blk_conv1_w": scale * jax.random.normal(ks[1], (3, 3, width, width), jnp.float32),
        "blk_bn1_g": jnp.ones((width,), jnp.float32),
        "blk_bn1_b": jnp.zeros((width,), jnp.float32),
        "blk_conv2_w": scale * jax.random.normal(ks[2], (3, 3, width, width), jnp.float32),
        "blk_bn2_g": jnp.ones((width,), jnp.float32),
        "blk_bn2_b": jnp.zeros((width,), jnp.float32),
        # head: Linear(width, latent_dim) + BatchNorm1d(latent_dim)
        "fc_w": scale * jax.random.normal(ks[3], (width, latent_dim), jnp.float32),
        "fc_b": 0.01 * jax.random.normal(ks[4], (latent_dim,), jnp.float32),
        "bn_fc_g": jnp.ones((latent_dim,), jnp.float32),
        "bn_fc_b": jnp.zeros((latent_dim,), jnp.float32),
    }


def encoder_forward(x_nchw, params):
    x = jnp.transpose(x_nchw, (0, 2, 3, 1)).astype(jnp.float32)   # NCHW -> NHWC

    # --- stem: conv7x7/2 -> BN -> ReLU (one fused kernel) -> maxpool3x3/2 ---
    h = conv_bn_act(x, params["conv1_w"], params["bn1_g"], params["bn1_b"],
                    stride=2, pad=3)
    h = maxpool2d(h)

    # --- one residual BasicBlock (64 -> 64): two fused conv+BN kernels ------
    y = conv_bn_act(h, params["blk_conv1_w"], params["blk_bn1_g"],
                    params["blk_bn1_b"], stride=1, pad=1)
    y = conv_bn_act(y, params["blk_conv2_w"], params["blk_bn2_g"],
                    params["blk_bn2_b"], stride=1, pad=1, residual=h)

    # --- AdaptiveAvgPool2d(1) + view(B,-1) + Linear + BatchNorm1d (fused) ---
    return pallas_pool_head(y, params["fc_w"], params["fc_b"],
                            params["bn_fc_g"], params["bn_fc_b"])


if __name__ == "__main__":
    key = jax.random.PRNGKey(0)
    k_x, k_p = jax.random.split(key)

    batch, in_channels, spatial, latent_dim = 2, 3, 16, 32
    x = jax.random.normal(k_x, (batch, in_channels, spatial, spatial), jnp.float32)
    params = init_params(k_p, in_channels, latent_dim)

    out = jax.jit(encoder_forward)(x, params)
    out = jax.block_until_ready(out)

    assert out.shape == (batch, latent_dim), out.shape
    assert jnp.all(jnp.isfinite(out))
    print("KERNEL_OK")
</pallas_src>

<mosaic_0001>
module attributes {stable_mosaic.version = 11 : i64} {
  func.func @_conv_bn_act_kernel(%arg0: i32, %arg1: memref<128x128xbf16, #tpu.memory_space<vmem>>, %arg2: memref<128x64xbf16, #tpu.memory_space<vmem>>, %arg3: memref<1x64xf32, #tpu.memory_space<vmem>>, %arg4: memref<1x64xf32, #tpu.memory_space<vmem>>, %arg5: memref<128x64xf32, #tpu.memory_space<vmem>>, %arg6: memref<128x64xf32, #tpu.memory_space<vmem>>) attributes {dimension_semantics = [#tpu.dimension_semantics<arbitrary>], iteration_bounds = array<i64: 2>, scalar_prefetch = 0 : i64, scratch_operands = 1 : i64, tpu.core_type = #tpu.core_type<tc>, window_params = [{transform_indices = @transform_0, window_bounds = array<i64: 128, 128>}, {transform_indices = @transform_1, window_bounds = array<i64: 128, 64>}, {pipeline_mode = #tpu.pipeline_mode<synchronous>, transform_indices = @transform_2, window_bounds = array<i64: 1, 64>}, {pipeline_mode = #tpu.pipeline_mode<synchronous>, transform_indices = @transform_3, window_bounds = array<i64: 1, 64>}, {pipeline_mode = #tpu.pipeline_mode<synchronous>, transform_indices = @transform_4, window_bounds = array<i64: 128, 64>}]} {
    %c0_i32 = arith.constant 0 : i32
    %0 = arith.cmpi eq, %arg0, %c0_i32 : i32
    %1 = arith.extui %0 : i1 to i32
    %c0_i32_0 = arith.constant 0 : i32
    %2 = arith.cmpi ne, %1, %c0_i32_0 : i32
    scf.if %2 {
      %cst_9 = arith.constant 0.000000e+00 : f32
      %12 = vector.broadcast %cst_9 : f32 to vector<128x64xf32>
      %c0_10 = arith.constant 0 : index
      %c0_11 = arith.constant 0 : index
      %13 = vector.load %arg6[%c0_10, %c0_11] : memref<128x64xf32, #tpu.memory_space<vmem>>, vector<128x64xf32>
      tpu.vector_store %arg6[%c0_10, %c0_11], %12 {strides = array<i32>} : memref<128x64xf32, #tpu.memory_space<vmem>>, vector<128x64xf32>,
    } else {
    }
    %c0 = arith.constant 0 : index
    %c0_1 = arith.constant 0 : index
    %3 = vector.load %arg6[%c0, %c0_1] : memref<128x64xf32, #tpu.memory_space<vmem>>, vector<128x64xf32>
    %c0_2 = arith.constant 0 : index
    %c0_3 = arith.constant 0 : index
    %4 = vector.load %arg1[%c0_2, %c0_3] : memref<128x128xbf16, #tpu.memory_space<vmem>>, vector<128x128xbf16>
    %c0_4 = arith.constant 0 : index
    %c0_5 = arith.constant 0 : index
    %5 = vector.load %arg2[%c0_4, %c0_5] : memref<128x64xbf16, #tpu.memory_space<vmem>>, vector<128x64xbf16>
    %cst = arith.constant dense<0.000000e+00> : vector<128x64xf32>
    %6 = tpu.matmul %4, %5, %cst {dimension_numbers = #tpu.dot_dimension_numbers<[1], [0], [0], [1], [0, 0, 1, 1], [], []>} : vector<128x128xbf16>, vector<128x64xbf16>, vector<128x64xf32> -> vector<128x64xf32>
    %7 = arith.addf %3, %6 : vector<128x64xf32>
    %c0_6 = arith.constant 0 : index
    %c0_7 = arith.constant 0 : index
    %8 = vector.load %arg6[%c0_6, %c0_7] : memref<128x64xf32, #tpu.memory_space<vmem>>, vector<128x64xf32>
    tpu.vector_store %arg6[%c0_6, %c0_7], %7 {strides = array<i32>} : memref<128x64xf32, #tpu.memory_space<vmem>>, vector<128x64xf32>,
    %c1_i32 = arith.constant 1 : i32
    %9 = arith.cmpi eq, %arg0, %c1_i32 : i32
    %10 = arith.extui %9 : i1 to i32
    %c0_i32_8 = arith.constant 0 : i32
    %11 = arith.cmpi ne, %10, %c0_i32_8 : i32
    scf.if %11 {
      %c0_9 = arith.constant 0 : index
      %c0_10 = arith.constant 0 : index
      %12 = vector.load %arg6[%c0_9, %c0_10] : memref<128x64xf32, #tpu.memory_space<vmem>>, vector<128x64xf32>
      %cst_11 = arith.constant dense<0.000000e+00> : vector<64xf32>
      %13 = vector.multi_reduction <add>, %12, %cst_11 [0] : vector<128x64xf32> to vector<64xf32>
      %14 = vector.shape_cast %13 : vector<64xf32> to vector<1x64xf32>
      %cst_12 = arith.constant 1.280000e+02 : f32
      %15 = vector.broadcast %cst_12 : f32 to vector<1x64xf32>
      %16 = arith.divf %14, %15 : vector<1x64xf32>
      %17 = vector.broadcast %16 : vector<1x64xf32> to vector<128x64xf32>
      %18 = arith.subf %12, %17 : vector<128x64xf32>
      %19 = arith.mulf %18, %18 : vector<128x64xf32>
      %cst_13 = arith.constant dense<0.000000e+00> : vector<64xf32>
      %20 = vector.multi_reduction <add>, %19, %cst_13 [0] : vector<128x64xf32> to vector<64xf32>
      %21 = vector.shape_cast %20 : vector<64xf32> to vector<1x64xf32>
      %cst_14 = arith.constant 1.280000e+02 : f32
      %22 = vector.broadcast %cst_14 : f32 to vector<1x64xf32>
      %23 = arith.divf %21, %22 : vector<1x64xf32>
      %cst_15 = arith.constant 0.000000e+00 : f32
      %24 = vector.broadcast %cst_15 : f32 to vector<1x64xf32>
      %25 = arith.maximumf %23, %24 : vector<1x64xf32>
      %c0_16 = arith.constant 0 : index
      %c0_17 = arith.constant 0 : index
      %26 = vector.load %arg3[%c0_16, %c0_17] : memref<1x64xf32, #tpu.memory_space<vmem>>, vector<1x64xf32>
      %27 = vector.broadcast %26 : vector<1x64xf32> to vector<128x64xf32>
      %28 = arith.mulf %27, %18 : vector<128x64xf32>
      %cst_18 = arith.constant 9.99999974E-6 : f32
      %29 = vector.broadcast %cst_18 : f32 to vector<1x64xf32>
      %30 = arith.addf %25, %29 : vector<1x64xf32>
      %31 = math.rsqrt %30 : vector<1x64xf32>
      %32 = vector.broadcast %31 : vector<1x64xf32> to vector<128x64xf32>
      %33 = arith.mulf %28, %32 : vector<128x64xf32>
      %c0_19 = arith.constant 0 : index
      %c0_20 = arith.constant 0 : index
      %34 = vector.load %arg4[%c0_19, %c0_20] : memref<1x64xf32, #tpu.memory_space<vmem>>, vector<1x64xf32>
      %35 = vector.broadcast %34 : vector<1x64xf32> to vector<128x64xf32>
      %36 = arith.addf %33, %35 : vector<128x64xf32>
      %cst_21 = arith.constant 0.000000e+00 : f32
      %37 = vector.broadcast %cst_21 : f32 to vector<128x64xf32>
      %38 = arith.maximumf %36, %37 : vector<128x64xf32>
      %c0_22 = arith.constant 0 : index
      %c0_23 = arith.constant 0 : index
      %39 = vector.load %arg5[%c0_22, %c0_23] : memref<128x64xf32, #tpu.memory_space<vmem>>, vector<128x64xf32>
      tpu.vector_store %arg5[%c0_22, %c0_23], %38 {strides = array<i32>} : memref<128x64xf32, #tpu.memory_space<vmem>>, vector<128x64xf32>,
    } else {
    }
    return
  }
  func.func @transform_0(%arg0: i32) -> (i32, i32) {
    %c0_i32 = arith.constant 0 : i32
    %c0_i32_0 = arith.constant 0 : i32
    return %c0_i32, %arg0 : i32, i32
  }
  func.func @transform_1(%arg0: i32) -> (i32, i32) {
    %c0_i32 = arith.constant 0 : i32
    %c0_i32_0 = arith.constant 0 : i32
    return %arg0, %c0_i32 : i32, i32
  }
  func.func @transform_2(%arg0: i32) -> (i32, i32) {
    %c0_i32 = arith.constant 0 : i32
    %c0_i32_0 = arith.constant 0 : i32
    %c0_i32_1 = arith.constant 0 : i32
    return %c0_i32, %c0_i32_0 : i32, i32
  }
  func.func @transform_3(%arg0: i32) -> (i32, i32) {
    %c0_i32 = arith.constant 0 : i32
    %c0_i32_0 = arith.constant 0 : i32
    %c0_i32_1 = arith.constant 0 : i32
    return %c0_i32, %c0_i32_0 : i32, i32
  }
  func.func @transform_4(%arg0: i32) -> (i32, i32) {
    %c0_i32 = arith.constant 0 : i32
    %c0_i32_0 = arith.constant 0 : i32
    %c0_i32_1 = arith.constant 0 : i32
    return %c0_i32, %c0_i32_0 : i32, i32
  }
}

module attributes {stable_mosaic.version = 11 : i64} {
  func.func @_conv_bn_act_kernel(%arg0: i32, %arg1: memref<32x128xbf16, #tpu.memory_space<vmem>>, %arg2: memref<128x64xbf16, #tpu.memory_space<vmem>>, %arg3: memref<1x64xf32, #tpu.memory_space<vmem>>, %arg4: memref<1x64xf32, #tpu.memory_space<vmem>>, %arg5: memref<32x64xf32, #tpu.memory_space<vmem>>, %arg6: memref<32x64xf32, #tpu.memory_space<vmem>>) attributes {dimension_semantics = [#tpu.dimension_semantics<arbitrary>], iteration_bounds = array<i64: 5>, scalar_prefetch = 0 : i64, scratch_operands = 1 : i64, tpu.core_type = #tpu.core_type<tc>, window_params = [{transform_indices = @transform_0, window_bounds = array<i64: 32, 128>}, {transform_indices = @transform_1, window_bounds = array<i64: 128, 64>}, {pipeline_mode = #tpu.pipeline_mode<synchronous>, transform_indices = @transform_2, window_bounds = array<i64: 1, 64>}, {pipeline_mode = #tpu.pipeline_mode<synchronous>, transform_indices = @transform_3, window_bounds = array<i64: 1, 64>}, {pipeline_mode = #tpu.pipeline_mode<synchronous>, transform_indices = @transform_4, window_bounds = array<i64: 32, 64>}]} {
    %c0_i32 = arith.constant 0 : i32
    %0 = arith.cmpi eq, %arg0, %c0_i32 : i32
    %1 = arith.extui %0 : i1 to i32
    %c0_i32_0 = arith.constant 0 : i32
    %2 = arith.cmpi ne, %1, %c0_i32_0 : i32
    scf.if %2 {
      %cst_9 = arith.constant 0.000000e+00 : f32
      %12 = vector.broadcast %cst_9 : f32 to vector<32x64xf32>
      %c0_10 = arith.constant 0 : index
      %c0_11 = arith.constant 0 : index
      %13 = vector.load %arg6[%c0_10, %c0_11] : memref<32x64xf32, #tpu.memory_space<vmem>>, vector<32x64xf32>
      tpu.vector_store %arg6[%c0_10, %c0_11], %12 {strides = array<i32>} : memref<32x64xf32, #tpu.memory_space<vmem>>, vector<32x64xf32>,
    } else {
    }
    %c0 = arith.constant 0 : index
    %c0_1 = arith.constant 0 : index
    %3 = vector.load %arg6[%c0, %c0_1] : memref<32x64xf32, #tpu.memory_space<vmem>>, vector<32x64xf32>
    %c0_2 = arith.constant 0 : index
    %c0_3 = arith.constant 0 : index
    %4 = vector.load %arg1[%c0_2, %c0_3] : memref<32x128xbf16, #tpu.memory_space<vmem>>, vector<32x128xbf16>
    %c0_4 = arith.constant 0 : index
    %c0_5 = arith.constant 0 : index
    %5 = vector.load %arg2[%c0_4, %c0_5] : memref<128x64xbf16, #tpu.memory_space<vmem>>, vector<128x64xbf16>
    %cst = arith.constant dense<0.000000e+00> : vector<32x64xf32>
    %6 = tpu.matmul %4, %5, %cst {dimension_numbers = #tpu.dot_dimension_numbers<[1], [0], [0], [1], [0, 0, 1, 1], [], []>} : vector<32x128xbf16>, vector<128x64xbf16>, vector<32x64xf32> -> vector<32x64xf32>
    %7 = arith.addf %3, %6 : vector<32x64xf32>
    %c0_6 = arith.constant 0 : index
    %c0_7 = arith.constant 0 : index
    %8 = vector.load %arg6[%c0_6, %c0_7] : memref<32x64xf32, #tpu.memory_space<vmem>>, vector<32x64xf32>
    tpu.vector_store %arg6[%c0_6, %c0_7], %7 {strides = array<i32>} : memref<32x64xf32, #tpu.memory_space<vmem>>, vector<32x64xf32>,
    %c4_i32 = arith.constant 4 : i32
    %9 = arith.cmpi eq, %arg0, %c4_i32 : i32
    %10 = arith.extui %9 : i1 to i32
    %c0_i32_8 = arith.constant 0 : i32
    %11 = arith.cmpi ne, %10, %c0_i32_8 : i32
    scf.if %11 {
      %c0_9 = arith.constant 0 : index
      %c0_10 = arith.constant 0 : index
      %12 = vector.load %arg6[%c0_9, %c0_10] : memref<32x64xf32, #tpu.memory_space<vmem>>, vector<32x64xf32>
      %cst_11 = arith.constant dense<0.000000e+00> : vector<64xf32>
      %13 = vector.multi_reduction <add>, %12, %cst_11 [0] : vector<32x64xf32> to vector<64xf32>
      %14 = vector.shape_cast %13 : vector<64xf32> to vector<1x64xf32>
      %cst_12 = arith.constant 3.200000e+01 : f32
      %15 = vector.broadcast %cst_12 : f32 to vector<1x64xf32>
      %16 = arith.divf %14, %15 : vector<1x64xf32>
      %17 = vector.broadcast %16 : vector<1x64xf32> to vector<32x64xf32>
      %18 = arith.subf %12, %17 : vector<32x64xf32>
      %19 = arith.mulf %18, %18 : vector<32x64xf32>
      %cst_13 = arith.constant dense<0.000000e+00> : vector<64xf32>
      %20 = vector.multi_reduction <add>, %19, %cst_13 [0] : vector<32x64xf32> to vector<64xf32>
      %21 = vector.shape_cast %20 : vector<64xf32> to vector<1x64xf32>
      %cst_14 = arith.constant 3.200000e+01 : f32
      %22 = vector.broadcast %cst_14 : f32 to vector<1x64xf32>
      %23 = arith.divf %21, %22 : vector<1x64xf32>
      %cst_15 = arith.constant 0.000000e+00 : f32
      %24 = vector.broadcast %cst_15 : f32 to vector<1x64xf32>
      %25 = arith.maximumf %23, %24 : vector<1x64xf32>
      %c0_16 = arith.constant 0 : index
      %c0_17 = arith.constant 0 : index
      %26 = vector.load %arg3[%c0_16, %c0_17] : memref<1x64xf32, #tpu.memory_space<vmem>>, vector<1x64xf32>
      %27 = vector.broadcast %26 : vector<1x64xf32> to vector<32x64xf32>
      %28 = arith.mulf %27, %18 : vector<32x64xf32>
      %cst_18 = arith.constant 9.99999974E-6 : f32
      %29 = vector.broadcast %cst_18 : f32 to vector<1x64xf32>
      %30 = arith.addf %25, %29 : vector<1x64xf32>
      %31 = math.rsqrt %30 : vector<1x64xf32>
      %32 = vector.broadcast %31 : vector<1x64xf32> to vector<32x64xf32>
      %33 = arith.mulf %28, %32 : vector<32x64xf32>
      %c0_19 = arith.constant 0 : index
      %c0_20 = arith.constant 0 : index
      %34 = vector.load %arg4[%c0_19, %c0_20] : memref<1x64xf32, #tpu.memory_space<vmem>>, vector<1x64xf32>
      %35 = vector.broadcast %34 : vector<1x64xf32> to vector<32x64xf32>
      %36 = arith.addf %33, %35 : vector<32x64xf32>
      %cst_21 = arith.constant 0.000000e+00 : f32
      %37 = vector.broadcast %cst_21 : f32 to vector<32x64xf32>
      %38 = arith.maximumf %36, %37 : vector<32x64xf32>
      %c0_22 = arith.constant 0 : index
      %c0_23 = arith.constant 0 : index
      %39 = vector.load %arg5[%c0_22, %c0_23] : memref<32x64xf32, #tpu.memory_space<vmem>>, vector<32x64xf32>
      tpu.vector_store %arg5[%c0_22, %c0_23], %38 {strides = array<i32>} : memref<32x64xf32, #tpu.memory_space<vmem>>, vector<32x64xf32>,
    } else {
    }
    return
  }
  func.func @transform_0(%arg0: i32) -> (i32, i32) {
    %c0_i32 = arith.constant 0 : i32
    %c0_i32_0 = arith.constant 0 : i32
    return %c0_i32, %arg0 : i32, i32
  }
  func.func @transform_1(%arg0: i32) -> (i32, i32) {
    %c0_i32 = arith.constant 0 : i32
    %c0_i32_0 = arith.constant 0 : i32
    return %arg0, %c0_i32 : i32, i32
  }
  func.func @transform_2(%arg0: i32) -> (i32, i32) {
    %c0_i32 = arith.constant 0 : i32
    %c0_i32_0 = arith.constant 0 : i32
    %c0_i32_1 = arith.constant 0 : i32
    return %c0_i32, %c0_i32_0 : i32, i32
  }
  func.func @transform_3(%arg0: i32) -> (i32, i32) {
    %c0_i32 = arith.constant 0 : i32
    %c0_i32_0 = arith.constant 0 : i32
    %c0_i32_1 = arith.constant 0 : i32
    return %c0_i32, %c0_i32_0 : i32, i32
  }
  func.func @transform_4(%arg0: i32) -> (i32, i32) {
    %c0_i32 = arith.constant 0 : i32
    %c0_i32_0 = arith.constant 0 : i32
    %c0_i32_1 = arith.constant 0 : i32
    return %c0_i32, %c0_i32_0 : i32, i32
  }
}

module attributes {stable_mosaic.version = 11 : i64} {
  func.func @_conv_bn_act_kernel(%arg0: i32, %arg1: memref<32x128xbf16, #tpu.memory_space<vmem>>, %arg2: memref<128x64xbf16, #tpu.memory_space<vmem>>, %arg3: memref<32x64xf32, #tpu.memory_space<vmem>>, %arg4: memref<1x64xf32, #tpu.memory_space<vmem>>, %arg5: memref<1x64xf32, #tpu.memory_space<vmem>>, %arg6: memref<32x64xf32, #tpu.memory_space<vmem>>, %arg7: memref<32x64xf32, #tpu.memory_space<vmem>>) attributes {dimension_semantics = [#tpu.dimension_semantics<arbitrary>], iteration_bounds = array<i64: 5>, scalar_prefetch = 0 : i64, scratch_operands = 1 : i64, tpu.core_type = #tpu.core_type<tc>, window_params = [{transform_indices = @transform_0, window_bounds = array<i64: 32, 128>}, {transform_indices = @transform_1, window_bounds = array<i64: 128, 64>}, {pipeline_mode = #tpu.pipeline_mode<synchronous>, transform_indices = @transform_2, window_bounds = array<i64: 32, 64>}, {pipeline_mode = #tpu.pipeline_mode<synchronous>, transform_indices = @transform_3, window_bounds = array<i64: 1, 64>}, {pipeline_mode = #tpu.pipeline_mode<synchronous>, transform_indices = @transform_4, window_bounds = array<i64: 1, 64>}, {pipeline_mode = #tpu.pipeline_mode<synchronous>, transform_indices = @transform_5, window_bounds = array<i64: 32, 64>}]} {
    %c0_i32 = arith.constant 0 : i32
    %0 = arith.cmpi eq, %arg0, %c0_i32 : i32
    %1 = arith.extui %0 : i1 to i32
    %c0_i32_0 = arith.constant 0 : i32
    %2 = arith.cmpi ne, %1, %c0_i32_0 : i32
    scf.if %2 {
      %cst_9 = arith.constant 0.000000e+00 : f32
      %12 = vector.broadcast %cst_9 : f32 to vector<32x64xf32>
      %c0_10 = arith.constant 0 : index
      %c0_11 = arith.constant 0 : index
      %13 = vector.load %arg7[%c0_10, %c0_11] : memref<32x64xf32, #tpu.memory_space<vmem>>, vector<32x64xf32>
      tpu.vector_store %arg7[%c0_10, %c0_11], %12 {strides = array<i32>} : memref<32x64xf32, #tpu.memory_space<vmem>>, vector<32x64xf32>,
    } else {
    }
    %c0 = arith.constant 0 : index
    %c0_1 = arith.constant 0 : index
    %3 = vector.load %arg7[%c0, %c0_1] : memref<32x64xf32, #tpu.memory_space<vmem>>, vector<32x64xf32>
    %c0_2 = arith.constant 0 : index
    %c0_3 = arith.constant 0 : index
    %4 = vector.load %arg1[%c0_2, %c0_3] : memref<32x128xbf16, #tpu.memory_space<vmem>>, vector<32x128xbf16>
    %c0_4 = arith.constant 0 : index
    %c0_5 = arith.constant 0 : index
    %5 = vector.load %arg2[%c0_4, %c0_5] : memref<128x64xbf16, #tpu.memory_space<vmem>>, vector<128x64xbf16>
    %cst = arith.constant dense<0.000000e+00> : vector<32x64xf32>
    %6 = tpu.matmul %4, %5, %cst {dimension_numbers = #tpu.dot_dimension_numbers<[1], [0], [0], [1], [0, 0, 1, 1], [], []>} : vector<32x128xbf16>, vector<128x64xbf16>, vector<32x64xf32> -> vector<32x64xf32>
    %7 = arith.addf %3, %6 : vector<32x64xf32>
    %c0_6 = arith.constant 0 : index
    %c0_7 = arith.constant 0 : index
    %8 = vector.load %arg7[%c0_6, %c0_7] : memref<32x64xf32, #tpu.memory_space<vmem>>, vector<32x64xf32>
    tpu.vector_store %arg7[%c0_6, %c0_7], %7 {strides = array<i32>} : memref<32x64xf32, #tpu.memory_space<vmem>>, vector<32x64xf32>,
    %c4_i32 = arith.constant 4 : i32
    %9 = arith.cmpi eq, %arg0, %c4_i32 : i32
    %10 = arith.extui %9 : i1 to i32
    %c0_i32_8 = arith.constant 0 : i32
    %11 = arith.cmpi ne, %10, %c0_i32_8 : i32
    scf.if %11 {
      %c0_9 = arith.constant 0 : index
      %c0_10 = arith.constant 0 : index
      %12 = vector.load %arg7[%c0_9, %c0_10] : memref<32x64xf32, #tpu.memory_space<vmem>>, vector<32x64xf32>
      %cst_11 = arith.constant dense<0.000000e+00> : vector<64xf32>
      %13 = vector.multi_reduction <add>, %12, %cst_11 [0] : vector<32x64xf32> to vector<64xf32>
      %14 = vector.shape_cast %13 : vector<64xf32> to vector<1x64xf32>
      %cst_12 = arith.constant 3.200000e+01 : f32
      %15 = vector.broadcast %cst_12 : f32 to vector<1x64xf32>
      %16 = arith.divf %14, %15 : vector<1x64xf32>
      %17 = vector.broadcast %16 : vector<1x64xf32> to vector<32x64xf32>
      %18 = arith.subf %12, %17 : vector<32x64xf32>
      %19 = arith.mulf %18, %18 : vector<32x64xf32>
      %cst_13 = arith.constant dense<0.000000e+00> : vector<64xf32>
      %20 = vector.multi_reduction <add>, %19, %cst_13 [0] : vector<32x64xf32> to vector<64xf32>
      %21 = vector.shape_cast %20 : vector<64xf32> to vector<1x64xf32>
      %cst_14 = arith.constant 3.200000e+01 : f32
      %22 = vector.broadcast %cst_14 : f32 to vector<1x64xf32>
      %23 = arith.divf %21, %22 : vector<1x64xf32>
      %cst_15 = arith.constant 0.000000e+00 : f32
      %24 = vector.broadcast %cst_15 : f32 to vector<1x64xf32>
      %25 = arith.maximumf %23, %24 : vector<1x64xf32>
      %c0_16 = arith.constant 0 : index
      %c0_17 = arith.constant 0 : index
      %26 = vector.load %arg4[%c0_16, %c0_17] : memref<1x64xf32, #tpu.memory_space<vmem>>, vector<1x64xf32>
      %27 = vector.broadcast %26 : vector<1x64xf32> to vector<32x64xf32>
      %28 = arith.mulf %27, %18 : vector<32x64xf32>
      %cst_18 = arith.constant 9.99999974E-6 : f32
      %29 = vector.broadcast %cst_18 : f32 to vector<1x64xf32>
      %30 = arith.addf %25, %29 : vector<1x64xf32>
      %31 = math.rsqrt %30 : vector<1x64xf32>
      %32 = vector.broadcast %31 : vector<1x64xf32> to vector<32x64xf32>
      %33 = arith.mulf %28, %32 : vector<32x64xf32>
      %c0_19 = arith.constant 0 : index
      %c0_20 = arith.constant 0 : index
      %34 = vector.load %arg5[%c0_19, %c0_20] : memref<1x64xf32, #tpu.memory_space<vmem>>, vector<1x64xf32>
      %35 = vector.broadcast %34 : vector<1x64xf32> to vector<32x64xf32>
      %36 = arith.addf %33, %35 : vector<32x64xf32>
      %c0_21 = arith.constant 0 : index
      %c0_22 = arith.constant 0 : index
      %37 = vector.load %arg3[%c0_21, %c0_22] : memref<32x64xf32, #tpu.memory_space<vmem>>, vector<32x64xf32>
      %38 = arith.addf %36, %37 : vector<32x64xf32>
      %cst_23 = arith.constant 0.000000e+00 : f32
      %39 = vector.broadcast %cst_23 : f32 to vector<32x64xf32>
      %40 = arith.maximumf %38, %39 : vector<32x64xf32>
      %c0_24 = arith.constant 0 : index
      %c0_25 = arith.constant 0 : index
      %41 = vector.load %arg6[%c0_24, %c0_25] : memref<32x64xf32, #tpu.memory_space<vmem>>, vector<32x64xf32>
      tpu.vector_store %arg6[%c0_24, %c0_25], %40 {strides = array<i32>} : memref<32x64xf32, #tpu.memory_space<vmem>>, vector<32x64xf32>,
    } else {
    }
    return
  }
  func.func @transform_0(%arg0: i32) -> (i32, i32) {
    %c0_i32 = arith.constant 0 : i32
    %c0_i32_0 = arith.constant 0 : i32
    return %c0_i32, %arg0 : i32, i32
  }
  func.func @transform_1(%arg0: i32) -> (i32, i32) {
    %c0_i32 = arith.constant 0 : i32
    %c0_i32_0 = arith.constant 0 : i32
    return %arg0, %c0_i32 : i32, i32
  }
  func.func @transform_2(%arg0: i32) -> (i32, i32) {
    %c0_i32 = arith.constant 0 : i32
    %c0_i32_0 = arith.constant 0 : i32
    %c0_i32_1 = arith.constant 0 : i32
    return %c0_i32, %c0_i32_0 : i32, i32
  }
  func.func @transform_3(%arg0: i32) -> (i32, i32) {
    %c0_i32 = arith.constant 0 : i32
    %c0_i32_0 = arith.constant 0 : i32
    %c0_i32_1 = arith.constant 0 : i32
    return %c0_i32, %c0_i32_0 : i32, i32
  }
  func.func @transform_4(%arg0: i32) -> (i32, i32) {
    %c0_i32 = arith.constant 0 : i32
    %c0_i32_0 = arith.constant 0 : i32
    %c0_i32_1 = arith.constant 0 : i32
    return %c0_i32, %c0_i32_0 : i32, i32
  }
  func.func @transform_5(%arg0: i32) -> (i32, i32) {
    %c0_i32 = arith.constant 0 : i32
    %c0_i32_0 = arith.constant 0 : i32
    %c0_i32_1 = arith.constant 0 : i32
    return %c0_i32, %c0_i32_0 : i32, i32
  }
}

module attributes {stable_mosaic.version = 11 : i64} {
  func.func @_pool_head_kernel(%arg0: memref<2x32xf32, #tpu.memory_space<vmem>>, %arg1: memref<32x64xf32, #tpu.memory_space<vmem>>, %arg2: memref<64x32xbf16, #tpu.memory_space<vmem>>, %arg3: memref<1x32xf32, #tpu.memory_space<vmem>>, %arg4: memref<1x32xf32, #tpu.memory_space<vmem>>, %arg5: memref<1x32xf32, #tpu.memory_space<vmem>>, %arg6: memref<2x32xf32, #tpu.memory_space<vmem>>) attributes {dimension_semantics = [], scalar_prefetch = 0 : i64, scratch_operands = 0 : i64, tpu.core_type = #tpu.core_type<tc>} {
    %c0 = arith.constant 0 : index
    %c0_0 = arith.constant 0 : index
    %0 = vector.load %arg0[%c0, %c0_0] : memref<2x32xf32, #tpu.memory_space<vmem>>, vector<2x32xf32>
    %c0_1 = arith.constant 0 : index
    %c0_2 = arith.constant 0 : index
    %1 = vector.load %arg1[%c0_1, %c0_2] : memref<32x64xf32, #tpu.memory_space<vmem>>, vector<32x64xf32>
    %cst = arith.constant dense<0.000000e+00> : vector<2x64xf32>
    %2 = tpu.matmul %0, %1, %cst {dimension_numbers = #tpu.dot_dimension_numbers<[1], [0], [0], [1], [0, 0, 1, 1], [], []>} : vector<2x32xf32>, vector<32x64xf32>, vector<2x64xf32> -> vector<2x64xf32>
    %3 = arith.truncf %2 : vector<2x64xf32> to vector<2x64xbf16>
    %c0_3 = arith.constant 0 : index
    %c0_4 = arith.constant 0 : index
    %4 = vector.load %arg2[%c0_3, %c0_4] : memref<64x32xbf16, #tpu.memory_space<vmem>>, vector<64x32xbf16>
    %cst_5 = arith.constant dense<0.000000e+00> : vector<2x32xf32>
    %5 = tpu.matmul %3, %4, %cst_5 {dimension_numbers = #tpu.dot_dimension_numbers<[1], [0], [0], [1], [0, 0, 1, 1], [], []>} : vector<2x64xbf16>, vector<64x32xbf16>, vector<2x32xf32> -> vector<2x32xf32>
    %c0_6 = arith.constant 0 : index
    %c0_7 = arith.constant 0 : index
    %6 = vector.load %arg3[%c0_6, %c0_7] : memref<1x32xf32, #tpu.memory_space<vmem>>, vector<1x32xf32>
    %7 = vector.broadcast %6 : vector<1x32xf32> to vector<2x32xf32>
    %8 = arith.addf %5, %7 : vector<2x32xf32>
    %cst_8 = arith.constant dense<0.000000e+00> : vector<32xf32>
    %9 = vector.multi_reduction <add>, %8, %cst_8 [0] : vector<2x32xf32> to vector<32xf32>
    %10 = vector.shape_cast %9 : vector<32xf32> to vector<1x32xf32>
    %cst_9 = arith.constant 2.000000e+00 : f32
    %11 = vector.broadcast %cst_9 : f32 to vector<1x32xf32>
    %12 = arith.divf %10, %11 : vector<1x32xf32>
    %13 = vector.broadcast %12 : vector<1x32xf32> to vector<2x32xf32>
    %14 = arith.subf %8, %13 : vector<2x32xf32>
    %15 = arith.mulf %14, %14 : vector<2x32xf32>
    %cst_10 = arith.constant dense<0.000000e+00> : vector<32xf32>
    %16 = vector.multi_reduction <add>, %15, %cst_10 [0] : vector<2x32xf32> to vector<32xf32>
    %17 = vector.shape_cast %16 : vector<32xf32> to vector<1x32xf32>
    %cst_11 = arith.constant 2.000000e+00 : f32
    %18 = vector.broadcast %cst_11 : f32 to vector<1x32xf32>
    %19 = arith.divf %17, %18 : vector<1x32xf32>
    %cst_12 = arith.constant 0.000000e+00 : f32
    %20 = vector.broadcast %cst_12 : f32 to vector<1x32xf32>
    %21 = arith.maximumf %19, %20 : vector<1x32xf32>
    %c0_13 = arith.constant 0 : index
    %c0_14 = arith.constant 0 : index
    %22 = vector.load %arg4[%c0_13, %c0_14] : memref<1x32xf32, #tpu.memory_space<vmem>>, vector<1x32xf32>
    %23 = vector.broadcast %22 : vector<1x32xf32> to vector<2x32xf32>
    %24 = arith.mulf %23, %14 : vector<2x32xf32>
    %cst_15 = arith.constant 9.99999974E-6 : f32
    %25 = vector.broadcast %cst_15 : f32 to vector<1x32xf32>
    %26 = arith.addf %21, %25 : vector<1x32xf32>
    %27 = math.rsqrt %26 : vector<1x32xf32>
    %28 = vector.broadcast %27 : vector<1x32xf32> to vector<2x32xf32>
    %29 = arith.mulf %24, %28 : vector<2x32xf32>
    %c0_16 = arith.constant 0 : index
    %c0_17 = arith.constant 0 : index
    %30 = vector.load %arg5[%c0_16, %c0_17] : memref<1x32xf32, #tpu.memory_space<vmem>>, vector<1x32xf32>
    %31 = vector.broadcast %30 : vector<1x32xf32> to vector<2x32xf32>
    %32 = arith.addf %29, %31 : vector<2x32xf32>
    %c0_18 = arith.constant 0 : index
    %c0_19 = arith.constant 0 : index
    %33 = vector.load %arg6[%c0_18, %c0_19] : memref<2x32xf32, #tpu.memory_space<vmem>>, vector<2x32xf32>
    tpu.vector_store %arg6[%c0_18, %c0_19], %32 {strides = array<i32>} : memref<2x32xf32, #tpu.memory_space<vmem>>, vector<2x32xf32>,
    return
  }
}

</mosaic_0001>

<llo_original>
// kernel: encoder_forward.5
$region0: #{encoder_forward.5}
  #allocation0 [shape = 'u32[]', space=smem, size = 0x4, offset = 0x4, fixed_abs, tag = 'smem constant byte address 0x4 - core index']
  #allocation1 [shape = 'u32[144,128]{1,0:T(1,128)}', space=vmem, size = 0x12000, scoped, tag = 'internal scratch']
  #allocation2 [shape = 'f32[32,64]{1,0:T(8,128)}', space=vmem, size = 0x4000, scoped, tag = 'scratch operand']
  %s0 = inlined_call_operand.vmem [shape: bf16[32,640], index: 0, kind: input, shape index: {}]
  %s1 = inlined_call_operand.vmem [shape: bf16[640,64], index: 1, kind: input, shape index: {}]
  %s2 = inlined_call_operand.vmem [shape: f32[1,64], index: 2, kind: input, shape index: {}]
  %s3 = inlined_call_operand.vmem [shape: f32[1,64], index: 3, kind: input, shape index: {}]
  %s4 = inlined_call_operand.vmem [shape: f32[32,64], index: 4, kind: output, shape index: {}]
  %s5 = sld [smem:[#allocation0]]
  $region98: #{encoder_forward.5} parent=0
    _
  %s7 = ssub.s32 1, %s5
  %s8 = scalar_select 0, %s7, %s5
  $region1: #{encoder_forward.5} parent=0
    #allocation3 [shape = 'u8[16384]{0}', space=vmem, size = 0x4000, scoped, tag = 'input window, operand 0']
    loop: start=0, step=1, limit=7
    $region2: #{encoder_forward.5} parent=1 // loop_pre_header
      _
    $region3: #{encoder_forward.5} parent=1 // loop_header
      %s10 = sphi 0, %s14
      %p11 = scmp.ge.s32.totalorder %s10, 7
      %s20 = sphi 0, %s22
      %s23 = sphi 0, %s20
      %s24 = sphi 0, %s23
      %s40 = sphi 0, %s24
      %s46 = sphi 0, %s48
      %s49 = sphi 0, %s46
      %s50 = sphi 0, %s49
      %s66 = sphi 0, %s50
      %s70 = sphi 0, %s70
      %s72 = sphi 0, %s70
      %s73 = sphi 0, %s72
      %s87 = sphi 0, %s73
      %s91 = sphi 0, %s91
      %s93 = sphi 0, %s91
      %s94 = sphi 0, %s93
      %s108 = sphi 0, %s94
      %s112 = sphi 0, %s112
      %s114 = sphi 0, %s112
      %s115 = sphi 0, %s114
      %s129 = sphi 0, %s115
    $region4: #{encoder_forward.5} parent=1 // loop_header_branch
      %13 = sbr.rel (%p11) target = $region8
    $region5: #{encoder_forward.5} parent=1 // loop_body
      %s15 = ssub.s32 %s10, 1
      %s16 = ssub.s32 %s10, 2
      %s17 = sadd.s32 %s10, 1
      %s18 = ssub.s32 %s10, %s17
      %p19 = scmp.eq.s32.totalorder %s18, 0
      %s21 = sadd.s32 %s20, 1
      %s22 = scalar_select %p19, %s20, %s21
      %p25 = pneg %p19
      %p26 = scmp.eq.s32.totalorder %s10, 4
      %p27 = por %p25, %p26
      %p28 = scmp.ne.s32.totalorder %s20, %s23
      %p29 = scmp.eq.s32.totalorder %s10, 0
      %p30 = por %p28, %p29
      %p31 = scmp.ne.s32.totalorder %s20, %s23
      %p32 = scmp.eq.s32.totalorder %s15, 4
      %p33 = por %p31, %p32
      %p34 = scmp.ne.s32.totalorder %s23, %s24
      %p35 = scmp.eq.s32.totalorder %s15, 0
      %p36 = por %p34, %p35
      %p37 = scmp.ne.s32.totalorder %s23, %s24
      %p38 = scmp.eq.s32.totalorder %s16, 4
      %p39 = por %p37, %p38
      %p41 = scmp.ne.s32.totalorder %s24, %s40
      %p42 = scmp.eq.s32.totalorder %s16, 0
      %p43 = por %p41, %p42
      %s44 = ssub.s32 %s10, %s17
      %p45 = scmp.eq.s32.totalorder %s44, 0
      %s47 = sadd.s32 %s46, 1
      %s48 = scalar_select %p45, %s46, %s47
      %p51 = pneg %p45
      %p52 = scmp.eq.s32.totalorder %s10, 4
      %p53 = por %p51, %p52
      %p54 = scmp.ne.s32.totalorder %s46, %s49
      %p55 = scmp.eq.s32.totalorder %s10, 0
      %p56 = por %p54, %p55
      %p57 = scmp.ne.s32.totalorder %s46, %s49
      %p58 = scmp.eq.s32.totalorder %s15, 4
      %p59 = por %p57, %p58
      %p60 = scmp.ne.s32.totalorder %s49, %s50
      %p61 = scmp.eq.s32.totalorder %s15, 0
      %p62 = por %p60, %p61
      %p63 = scmp.ne.s32.totalorder %s49, %s50
      %p64 = scmp.eq.s32.totalorder %s16, 4
      %p65 = por %p63, %p64
      %p67 = scmp.ne.s32.totalorder %s50, %s66
      %p68 = scmp.eq.s32.totalorder %s16, 0
      %p69 = por %p67, %p68
      %s71 = sadd.s32 %s70, 1
      %p74 = scmp.eq.s32.totalorder %s10, 4
      %p75 = scmp.ne.s32.totalorder %s70, %s72
      %p76 = scmp.eq.s32.totalorder %s10, 0
      %p77 = por %p75, %p76
      %p78 = scmp.ne.s32.totalorder %s70, %s72
      %p79 = scmp.eq.s32.totalorder %s15, 4
      %p80 = por %p78, %p79
      %p81 = scmp.ne.s32.totalorder %s72, %s73
      %p82 = scmp.eq.s32.totalorder %s15, 0
      %p83 = por %p81, %p82
      %p84 = scmp.ne.s32.totalorder %s72, %s73
      %p85 = scmp.eq.s32.totalorder %s16, 4
      %p86 = por %p84, %p85
      %p88 = scmp.ne.s32.totalorder %s73, %s87
      %p89 = scmp.eq.s32.totalorder %s16, 0
      %p90 = por %p88, %p89
      %s92 = sadd.s32 %s91, 1
      %p95 = scmp.eq.s32.totalorder %s10, 4
      %p96 = scmp.ne.s32.totalorder %s91, %s93
      %p97 = scmp.eq.s32.totalorder %s10, 0
      %p98 = por %p96, %p97
      %p99 = scmp.ne.s32.totalorder %s91, %s93
      %p100 = scmp.eq.s32.totalorder %s15, 4
      %p101 = por %p99, %p100
      %p102 = scmp.ne.s32.totalorder %s93, %s94
      %p103 = scmp.eq.s32.totalorder %s15, 0
      %p104 = por %p102, %p103
      %p105 = scmp.ne.s32.totalorder %s93, %s94
      %p106 = scmp.eq.s32.totalorder %s16, 4
      %p107 = por %p105, %p106
      %p109 = scmp.ne.s32.totalorder %s94, %s108
      %p110 = scmp.eq.s32.totalorder %s16, 0
      %p111 = por %p109, %p110
      %s113 = sadd.s32 %s112, 1
      %p116 = scmp.eq.s32.totalorder %s10, 4
      %p117 = scmp.ne.s32.totalorder %s112, %s114
      %p118 = scmp.eq.s32.totalorder %s10, 0
      %p119 = por %p117, %p118
      %p120 = scmp.ne.s32.totalorder %s112, %s114
      %p121 = scmp.eq.s32.totalorder %s15, 4
      %p122 = por %p120, %p121
      %p123 = scmp.ne.s32.totalorder %s114, %s115
      %p124 = scmp.eq.s32.totalorder %s15, 0
      %p125 = por %p123, %p124
      %p126 = scmp.ne.s32.totalorder %s114, %s115
      %p127 = scmp.eq.s32.totalorder %s16, 4
      %p128 = por %p126, %p127
      %p130 = scmp.ne.s32.totalorder %s115, %s129
      %p131 = scmp.eq.s32.totalorder %s16, 0
      %p132 = por %p130, %p131
      %p133 = scmp.le.s32.totalorder 1, %s10
      %p134 = scmp.lt.s32.totalorder %s10, 6
      %p135 = pnand %p133, %p134
      %p136 = pneg %p135
      // Predicated region
      $region9: #{encoder_forward.5} parent=5 // pred_check
        _
      $region10: #{encoder_forward.5} parent=5 // pred_check_branch
        %138 = sbr.rel (%p135) target = $region12
      $region11: #{encoder_forward.5} parent=5 // pred_region
        %s139 = ssub.s32 %s10, 1
        // Predicated region
        $region13: #{encoder_forward.5} parent=11 // pred_check
          %p140 = pneg %p83
        $region14: #{encoder_forward.5} parent=11 // pred_check_branch
          %142 = sbr.rel (%p140) target = $region16
        $region15: #{encoder_forward.5} parent=11 // pred_region
          _
        $region16: #{encoder_forward.5} parent=11 // pred_fallthru
          _
        // Predicated region
        $region17: #{encoder_forward.5} parent=11 // pred_check
          %p143 = pneg %p104
        $region18: #{encoder_forward.5} parent=11 // pred_check_branch
          %145 = sbr.rel (%p143) target = $region20
        $region19: #{encoder_forward.5} parent=11 // pred_region
          _
        $region20: #{encoder_forward.5} parent=11 // pred_fallthru
          _
      $region12: #{encoder_forward.5} parent=5 // pred_fallthru
        _
      %p146 = scmp.lt.s32.totalorder %s10, 5
      // Predicated region
      $region21: #{encoder_forward.5} parent=5 // pred_check
        %p147 = pneg %p146
      $region22: #{encoder_forward.5} parent=5 // pred_check_branch
        %149 = sbr.rel (%p147) target = $region24
      $region23: #{encoder_forward.5} parent=5 // pred_region
        // Predicated region
        $region25: #{encoder_forward.5} parent=23 // pred_check
          %p150 = pneg %p30
        $region26: #{encoder_forward.5} parent=23 // pred_check_branch
          %152 = sbr.rel (%p150) target = $region28
        $region27: #{encoder_forward.5} parent=23 // pred_region
          %s153 = sand.u32 %s20, 1
          %s154 = sand.u32 %s20, 1
          %s155 = smul.addr %s154, 16
          %s156 = scalar_lea.vmem [#allocation3], %s155
          %s157 = smul.addr %s10, 4
          %s158 = scalar_lea.vmem %s0, %s157
          // Predicated region
          $region29: #{encoder_forward.5} parent=27 // pred_check
            _
          $region30: #{encoder_forward.5} parent=27 // pred_check_branch
            %160 = sbr.rel (0) target = $region32
          $region31: #{encoder_forward.5} parent=27 // pred_region
            // Predicated region
            $region33: #{encoder_forward.5} parent=31 // pred_check
              _
            $region34: #{encoder_forward.5} parent=31 // pred_check_branch
              %162 = sbr.rel target = $region36
            $region35: #{encoder_forward.5} parent=31 // pred_region
              // Predicated region
              $region48: #{encoder_forward.5} parent=35 // pred_check
                _
              $region49: #{encoder_forward.5} parent=35 // pred_check_branch
                %183 = sbr.rel (0) target = $region51
              $region50: #{encoder_forward.5} parent=35 // pred_region
                loop: start=0, step=1, limit=1
                $region52: #{encoder_forward.5} parent=50 // loop_pre_header
                  _
                $region53: #{encoder_forward.5} parent=50 // loop_header
                  %s185 = sphi 0, %s189
                  %p186 = scmp.ge.s32.totalorder %s185, 1
                  %s190 = sphi %s158, %s158
                  %s191 = sphi %s156, %s156
                $region54: #{encoder_forward.5} parent=50 // loop_header_branch
                  %188 = sbr.rel (%p186) target = $region58
                $region55: #{encoder_forward.5} parent=50 // loop_body
                  _
                $region56: #{encoder_forward.5} parent=50 // loop_footer
                  %s189 = sadd.s32 1, %s185
                $region57: #{encoder_forward.5} parent=50 // loop_footer_branch
                  %184 = sbr.rel target = $region53
                $region58: #{encoder_forward.5} parent=50 // loop_exit
                  _
                loop: start=0, step=1, limit=1
                $region59: #{encoder_forward.5} parent=50 // loop_pre_header
                  _
                $region60: #{encoder_forward.5} parent=50 // loop_header
                  %s194 = sphi 0, %s198
                  %p195 = scmp.ge.s32.totalorder %s194, 1
                  %s199 = sphi %s158, %s158
                  %s200 = sphi %s156, %s156
                $region61: #{encoder_forward.5} parent=50 // loop_header_branch
                  %197 = sbr.rel (%p195) target = $region65
                $region62: #{encoder_forward.5} parent=50 // loop_body
                  %v201 = vld [vmem:[%s199] sm:$0xf]
                  %202 = vst [vmem:[%s200] sm:$0xf] %v201
                  %v203 = vld [vmem:[%s199 + $0x14] sm:$0xf]
                  %204 = vst [vmem:[%s200 + $0x4] sm:$0xf] %v203
                  %v205 = vld [vmem:[%s199 + $0x28] sm:$0xf]
                  %206 = vst [vmem:[%s200 + $0x8] sm:$0xf] %v205
                  %v207 = vld [vmem:[%s199 + $0x3c] sm:$0xf]
                  %208 = vst [vmem:[%s200 + $0xc] sm:$0xf] %v207
                $region63: #{encoder_forward.5} parent=50 // loop_footer
                  %s198 = sadd.s32 1, %s194
                $region64: #{encoder_forward.5} parent=50 // loop_footer_branch
                  %193 = sbr.rel target = $region60
                $region65: #{encoder_forward.5} parent=50 // loop_exit
                  _
              $region51: #{encoder_forward.5} parent=35 // pred_fallthru
                _
            $region36: #{encoder_forward.5} parent=31 // pred_fallthru
              _
            // Predicated region
            $region37: #{encoder_forward.5} parent=31 // pred_check
              _
            $region38: #{encoder_forward.5} parent=31 // pred_check_branch
              %164 = sbr.rel (0) target = $region40
            $region39: #{encoder_forward.5} parent=31 // pred_region
              loop: start=0, step=1, limit=1
              $region41: #{encoder_forward.5} parent=39 // loop_pre_header
                _
              $region42: #{encoder_forward.5} parent=39 // loop_header
                %s167 = sphi 0, %s171
                %p168 = scmp.ge.s32.totalorder %s167, 1
                %s172 = sphi %s158, %s158
                %s173 = sphi %s156, %s156
              $region43: #{encoder_forward.5} parent=39 // loop_header_branch
                %170 = sbr.rel (%p168) target = $region47
              $region44: #{encoder_forward.5} parent=39 // loop_body
                %v174 = vld [vmem:[%s172] sm:$0xf]
                %175 = vst [vmem:[%s173] sm:$0xf] %v174
                %v176 = vld [vmem:[%s172 + $0x14] sm:$0xf]
                %177 = vst [vmem:[%s173 + $0x4] sm:$0xf] %v176
                %v178 = vld [vmem:[%s172 + $0x28] sm:$0xf]
                %179 = vst [vmem:[%s173 + $0x8] sm:$0xf] %v178
                %v180 = vld [vmem:[%s172 + $0x3c] sm:$0xf]
                %181 = vst [vmem:[%s173 + $0xc] sm:$0xf] %v180
              $region45: #{encoder_forward.5} parent=39 // loop_footer
                %s171 = sadd.s32 1, %s167
              $region46: #{encoder_forward.5} parent=39 // loop_footer_branch
                %166 = sbr.rel target = $region42
              $region47: #{encoder_forward.5} parent=39 // loop_exit
                _
            $region40: #{encoder_forward.5} parent=31 // pred_fallthru
              _
          $region32: #{encoder_forward.5} parent=27 // pred_fallthru
            _
          %209 = vnop
        $region28: #{encoder_forward.5} parent=23 // pred_fallthru
          _
        // Predicated region
        $region66: #{encoder_forward.5} parent=23 // pred_check
          %p210 = pneg %p56
        $region67: #{encoder_forward.5} parent=23 // pred_check_branch
          %212 = sbr.rel (%p210) target = $region69
        $region68: #{encoder_forward.5} parent=23 // pred_region
          %s213 = smul.u32 16, %s10
          %p214 = scmp.lt.s32.totalorder %s213, 79
          %s215 = scalar_select %p214, %s213, 79
          %s216 = smul.addr %s215, 4
          %s217 = scalar_lea.vmem %s1, %s216
          %s218 = smul.u32 16, %s10
        $region69: #{encoder_forward.5} parent=23 // pred_fallthru
          _
      $region24: #{encoder_forward.5} parent=5 // pred_fallthru
        _
      %p219 = scmp.le.s32.totalorder 1, %s10
      %p220 = scmp.lt.s32.totalorder %s10, 6
      %p221 = pnand %p219, %p220
      %p222 = pneg %p221
      // Predicated region
      $region70: #{encoder_forward.5} parent=5 // pred_check
        _
      $region71: #{encoder_forward.5} parent=5 // pred_check_branch
        %224 = sbr.rel (%p221) target = $region73
      $region72: #{encoder_forward.5} parent=5 // pred_region
        %s225 = ssub.s32 %s10, 1
        %s226 = sand.u32 %s23, 1
        %s227 = sand.u32 %s23, 1
        %s228 = smul.addr %s227, 16
        %s229 = scalar_lea.vmem [#allocation3], %s228
        // Predicated region
        $region74: #{encoder_forward.5} parent=72 // pred_check
          %p230 = pneg %p36
        $region75: #{encoder_forward.5} parent=72 // pred_check_branch
          %232 = sbr.rel (%p230) target = $region77
        $region76: #{encoder_forward.5} parent=72 // pred_region
          _
        $region77: #{encoder_forward.5} parent=72 // pred_fallthru
          _
        %s233 = sand.u32 %s23, 1
        %s234 = sand.u32 %s23, 1
        %s235 = smul.addr %s234, 16
        %s236 = scalar_lea.vmem [#allocation3], %s235
        %p237 = pneg %p36
        %p238 = pneg %p33
        %s239 = smul.u32 16, %s15
        %p240 = scmp.lt.s32.totalorder %s239, 79
        %s241 = scalar_select %p240, %s239, 79
        %s242 = smul.addr %s241, 4
        %s243 = scalar_lea.vmem %s1, %s242
        %p244 = pneg %p62
        %p245 = pneg %p59
        %p246 = pneg %p83
        %p247 = pneg %p80
        %p248 = pneg %p104
        %p249 = pneg %p101
        %p250 = pneg %p125
        %p251 = pneg %p122
        %s252 = smul.u32 16, %s15
        %p253 = scmp.lt.s32.totalorder %s252, 79
        %s254 = scalar_select %p253, %s252, 79
        %s255 = smul.addr %s254, 4
        %s256 = scalar_lea.vmem %s1, %s255
        %s257 = smul.u32 16, %s15
        %p259 = scmp.eq.s32.totalorder %s15, 0
        // Predicated region
        $region78: #{encoder_forward.5} parent=72 // pred_check
          %p260 = pneg %p259
        $region79: #{encoder_forward.5} parent=72 // pred_check_branch
          %262 = sbr.rel (%p260) target = $region81
        $region80: #{encoder_forward.5} parent=72 // pred_region
          %vm263 = vcmask 523264
          %264 = vst.msk [vmem:[#allocation2] sm:$0xff] %vm263, 0.0
          %265 = vst.msk [vmem:[#allocation2 + $0x8] sm:$0xff] %vm263, 0.0
          %266 = vst.msk [vmem:[#allocation2 + $0x10] sm:$0xff] %vm263, 0.0
          %267 = vst.msk [vmem:[#allocation2 + $0x18] sm:$0xff] %vm263, 0.0
        $region81: #{encoder_forward.5} parent=72 // pred_fallthru
          _
        %v268 = vld [vmem:[#allocation2] sm:$0xff]
        %v269 = vld [vmem:[#allocation2 + $0x8] sm:$0xff]
        %v270 = vld [vmem:[#allocation2 + $0x10] sm:$0xff]
        %v271 = vld [vmem:[#allocation2 + $0x18] sm:$0xff]
        %v272 = vld [vmem:[%s229] sm:$0xf]
        %v273 = vld [vmem:[%s229 + $0x4] sm:$0xf]
        %v274 = vld [vmem:[%s229 + $0x8] sm:$0xf]
        %v275 = vld [vmem:[%s229 + $0xc] sm:$0xf]
        %v276 = vld [vmem:[%s256] sm:$0xf]
        %v277 = vld [vmem:[%s256 + $0x4] sm:$0xf]
        %v278 = vld [vmem:[%s256 + $0x8] sm:$0xf]
        %v279 = vld [vmem:[%s256 + $0xc] sm:$0xf]
        %v280 = vld [vmem:[%s256 + $0x10] sm:$0xf]
        %v281 = vld [vmem:[%s256 + $0x14] sm:$0xf]
        %v282 = vld [vmem:[%s256 + $0x18] sm:$0xf]
        %v283 = vld [vmem:[%s256 + $0x1c] sm:$0xf]
        %v284 = vld [vmem:[%s256 + $0x20] sm:$0xf]
        %v285 = vld [vmem:[%s256 + $0x24] sm:$0xf]
        %v286 = vld [vmem:[%s256 + $0x28] sm:$0xf]
        %v287 = vld [vmem:[%s256 + $0x2c] sm:$0xf]
        %v288 = vld [vmem:[%s256 + $0x30] sm:$0xf]
        %v289 = vld [vmem:[%s256 + $0x34] sm:$0xf]
        %v290 = vld [vmem:[%s256 + $0x38] sm:$0xf]
        %v291 = vld [vmem:[%s256 + $0x3c] sm:$0xf]
        %v296 = vunpack.c.l.b16 %v272
        %v297 = vunpack.c.l.b16 %v273
        %v298 = vunpack.c.l.b16 %v274
        %v299 = vunpack.c.l.b16 %v275
        %v300 = vpack.c.b16 %v297, %v296
        %v301 = vpack.c.b16 %v299, %v298
        %v320 = vunpack.c.l.b16 %v276
        %v321 = vunpack.c.l.b16 %v277
        %v322 = vunpack.c.l.b16 %v278
        %v323 = vunpack.c.l.b16 %v279
        %v324 = vunpack.c.l.b16 %v280
        %v325 = vunpack.c.l.b16 %v281
        %v326 = vunpack.c.l.b16 %v282
        %v327 = vunpack.c.l.b16 %v283
        %v328 = vunpack.c.l.b16 %v284
        %v329 = vunpack.c.l.b16 %v285
        %v330 = vunpack.c.l.b16 %v286
        %v331 = vunpack.c.l.b16 %v287
        %v332 = vunpack.c.l.b16 %v288
        %v333 = vunpack.c.l.b16 %v289
        %v334 = vunpack.c.l.b16 %v290
        %v335 = vunpack.c.l.b16 %v291
        %v336 = vpack.c.b16 %v321, %v320
        %v337 = vpack.c.b16 %v323, %v322
        %v338 = vpack.c.b16 %v325, %v324
        %v339 = vpack.c.b16 %v327, %v326
        %v340 = vpack.c.b16 %v329, %v328
        %v341 = vpack.c.b16 %v331, %v330
        %v342 = vpack.c.b16 %v333, %v332
        %v343 = vpack.c.b16 %v335, %v334
        %352 = vmatprep.subr.bf16.mxu0 0
        %353 = vmatpush1.bf16.msra.mxu0 %v336
        %354 = vmatprep.subr.bf16.mxu0 0
        %355 = vmatpush1.bf16.msra.mxu0 %v337
        %356 = vmatprep.subr.bf16.mxu0 0
        %357 = vmatpush1.bf16.msra.mxu0 %v338
        %358 = vmatprep.subr.bf16.mxu0 0
        %359 = vmatpush1.bf16.msra.mxu0 %v339
        %360 = vmatprep.subr.bf16.mxu0 0
        %361 = vmatpush1.bf16.msra.mxu0 %v340
        %362 = vmatprep.subr.bf16.mxu0 0
        %363 = vmatpush1.bf16.msra.mxu0 %v341
        %364 = vmatprep.subr.bf16.mxu0 0
        %365 = vmatpush1.bf16.msra.mxu0 %v342
        %366 = vmatprep.subr.bf16.mxu0 0
        %367 = vmatpush1.bf16.msra.mxu0 %v343
        %368 = vmatprep.subr.bf16.mxu0 0
        %369 = vmatpush1.bf16.msra.mxu0 0
        %370 = vmatprep.subr.bf16.mxu0 0
        %371 = vmatpush1.bf16.msra.mxu0 0
        %372 = vmatprep.subr.bf16.mxu0 0
        %373 = vmatpush1.bf16.msra.mxu0 0
        %374 = vmatprep.subr.bf16.mxu0 0
        %375 = vmatpush1.bf16.msra.mxu0 0
        %376 = vmatprep.subr.bf16.mxu0 0
        %377 = vmatpush1.bf16.msra.mxu0 0
        %378 = vmatprep.subr.bf16.mxu0 0
        %379 = vmatpush1.bf16.msra.mxu0 0
        %380 = vmatprep.subr.bf16.mxu0 0
        %381 = vmatpush1.bf16.msra.mxu0 0
        %382 = vmatprep.subr.bf16.mxu0 0
        %383 = vmatpush1.bf16.msra.mxu0 0
        %384 = vmatprep.mubr.bf16.mxu0 0
        %385 = vmatmul.mubr.bf16.gmra.mrb[0].mxu0 %v300
        %v386 = vpop.f32.mrb[0].mxu0
        %v387 = vadd.f32 0.0, %v386
        %v388 = vpop.f32.mrb[0].mxu0
        %v389 = vpop.f32.mrb[0].mxu0
        %v390 = vadd.f32 0.0, %v389
        %v391 = vpop.f32.mrb[0].mxu0
        %392 = vmatprep.mubr.bf16.mxu0 0
        %393 = vmatmul.mubr.bf16.gmra.mrb[0].mxu0 %v301
        %v394 = vpop.f32.mrb[0].mxu0
        %v395 = vadd.f32 0.0, %v394
        %v396 = vpop.f32.mrb[0].mxu0
        %v397 = vpop.f32.mrb[0].mxu0
        %v398 = vadd.f32 0.0, %v397
        %v399 = vpop.f32.mrb[0].mxu0
        %400 = vdwg.mxu0
        %v401 = vadd.f32 %v268, %v387
        %v402 = vadd.f32 %v269, %v390
        %v403 = vadd.f32 %v270, %v395
        %v404 = vadd.f32 %v271, %v398
        %vm405 = vcmask 523264
        %406 = vst.msk [vmem:[#allocation2] sm:$0xff] %vm405, %v401
        %407 = vst.msk [vmem:[#allocation2 + $0x8] sm:$0xff] %vm405, %v402
        %408 = vst.msk [vmem:[#allocation2 + $0x10] sm:$0xff] %vm405, %v403
        %409 = vst.msk [vmem:[#allocation2 + $0x18] sm:$0xff] %vm405, %v404
        %p410 = scmp.eq.s32.totalorder %s15, 4
        // Predicated region
        $region82: #{encoder_forward.5} parent=72 // pred_check
          %p411 = pneg %p410
        $region83: #{encoder_forward.5} parent=72 // pred_check_branch
          %413 = sbr.rel (%p411) target = $region85
        $region84: #{encoder_forward.5} parent=72 // pred_region
          %v414 = vld [vmem:[#allocation2] sm:$0xff]
          %v415 = vld [vmem:[#allocation2 + $0x8] sm:$0xff]
          %v416 = vld [vmem:[#allocation2 + $0x10] sm:$0xff]
          %v417 = vld [vmem:[#allocation2 + $0x18] sm:$0xff]
          %v418 = vsel %vm405, %v414, 0.0
          %v419 = vsel %vm405, %v415, 0.0
          %v420 = vadd.f32 %v418, %v419
          %v421 = vsel %vm405, %v416, 0.0
          %v422 = vadd.f32 %v420, %v421
          %v423 = vsel %vm405, %v417, 0.0
          %v424 = vadd.f32 %v422, %v423
          %v425 = vrot.slane %v424, 4
          %v426 = vadd.f32 %v424, %v425
          %v427 = vrot.slane %v426, 2
          %v428 = vadd.f32 %v426, %v427
          %v429 = vrot.slane %v428, 1
          %v430 = vadd.f32 %v428, %v429
          %v431 = vrcp.pop 32.0
          %v432 = vmul.f32 %v430, %v431
          %v433 = vsub.f32 %v414, %v432
          %v434 = vsub.f32 %v415, %v432
          %v435 = vsub.f32 %v416, %v432
          %v436 = vsub.f32 %v417, %v432
          %v437 = vmul.f32 %v433, %v433
          %v438 = vmul.f32 %v434, %v434
          %v439 = vmul.f32 %v435, %v435
          %v440 = vmul.f32 %v436, %v436
          %v441 = vsel %vm405, %v437, 0.0
          %v442 = vsel %vm405, %v438, 0.0
          %v443 = vadd.f32 %v441, %v442
          %v444 = vsel %vm405, %v439, 0.0
          %v445 = vadd.f32 %v443, %v444
          %v446 = vsel %vm405, %v440, 0.0
          %v447 = vadd.f32 %v445, %v446
          %v448 = vrot.slane %v447, 4
          %v449 = vadd.f32 %v447, %v448
          %v450 = vrot.slane %v449, 2
          %v451 = vadd.f32 %v449, %v450
          %v452 = vrot.slane %v451, 1
          %v453 = vadd.f32 %v451, %v452
          %v454 = vmul.f32 %v453, %v431
          %v455 = vmax.f32 %v454, 0.0
          %v456 = vld [vmem:[%s2] sm:$0x1]
          %v458 = vlaneseq
          %v459 = vshrl.u32 %v458, 7
          %v460 = vsub.s32 0, %v459
          %v461 = vrot.slane %v456, %v460
          %v463 = vmul.f32 %v461, %v433
          %v464 = vmul.f32 %v461, %v434
          %v465 = vmul.f32 %v461, %v435
          %v466 = vmul.f32 %v461, %v436
          %v467 = vadd.f32 %v455, 1e-05
          %v468 = vrsqrt.pop %v467
          %v469 = vmul.f32 %v463, %v468
          %v470 = vmul.f32 %v464, %v468
          %v471 = vmul.f32 %v465, %v468
          %v472 = vmul.f32 %v466, %v468
          %v473 = vld [vmem:[%s3] sm:$0x1]
          %v475 = vlaneseq
          %v476 = vshrl.u32 %v475, 7
          %v477 = vsub.s32 0, %v476
          %v478 = vrot.slane %v473, %v477
          %v480 = vadd.f32 %v469, %v478
          %v481 = vadd.f32 %v470, %v478
          %v482 = vadd.f32 %v471, %v478
          %v483 = vadd.f32 %v472, %v478
          %v484 = vmax.f32 %v480, 0.0
          %v485 = vmax.f32 %v481, 0.0
          %v486 = vmax.f32 %v482, 0.0
          %v487 = vmax.f32 %v483, 0.0
          %488 = vst.msk [vmem:[%s4] sm:$0xff] %vm405, %v484
          %489 = vst.msk [vmem:[%s4 + $0x8] sm:$0xff] %vm405, %v485
          %490 = vst.msk [vmem:[%s4 + $0x10] sm:$0xff] %vm405, %v486
          %491 = vst.msk [vmem:[%s4 + $0x18] sm:$0xff] %vm405, %v487
        $region85: #{encoder_forward.5} parent=72 // pred_fallthru
          _
        // Predicated region
        $region86: #{encoder_forward.5} parent=72 // pred_check
          %p492 = pneg %p122
        $region87: #{encoder_forward.5} parent=72 // pred_check_branch
          %494 = sbr.rel (%p492) target = $region89
        $region88: #{encoder_forward.5} parent=72 // pred_region
          _
        $region89: #{encoder_forward.5} parent=72 // pred_fallthru
          _
        // Predicated region
        $region90: #{encoder_forward.5} parent=72 // pred_check
          %p495 = pneg %p122
        $region91: #{encoder_forward.5} parent=72 // pred_check_branch
          %497 = sbr.rel (%p495) target = $region93
        $region92: #{encoder_forward.5} parent=72 // pred_region
          _
        $region93: #{encoder_forward.5} parent=72 // pred_fallthru
          _
      $region73: #{encoder_forward.5} parent=5 // pred_fallthru
        _
      %p498 = scmp.le.s32.totalorder 2, %s10
      // Predicated region
      $region94: #{encoder_forward.5} parent=5 // pred_check
        %p499 = pneg %p498
      $region95: #{encoder_forward.5} parent=5 // pred_check_branch
        %501 = sbr.rel (%p499) target = $region97
      $region96: #{encoder_forward.5} parent=5 // pred_region
        %s502 = ssub.s32 %s10, 2
      $region97: #{encoder_forward.5} parent=5 // pred_fallthru
        _
    $region6: #{encoder_forward.5} parent=1 // loop_footer
      %s14 = sadd.s32 1, %s10
    $region7: #{encoder_forward.5} parent=1 // loop_footer_branch
      %9 = sbr.rel target = $region3
    $region8: #{encoder_forward.5} parent=1 // loop_exit
      _

// kernel: encoder_forward.4
$region0: #{encoder_forward.4}
  #allocation0 [shape = 'u32[]', space=smem, size = 0x4, offset = 0x4, fixed_abs, tag = 'smem constant byte address 0x4 - core index']
  #allocation1 [shape = 'u32[144,128]{1,0:T(1,128)}', space=vmem, size = 0x12000, scoped, tag = 'internal scratch']
  #allocation2 [shape = 'f32[128,64]{1,0:T(8,128)}', space=vmem, size = 0x10000, scoped, tag = 'scratch operand']
  %s0 = inlined_call_operand.vmem [shape: bf16[128,256], index: 0, kind: input, shape index: {}]
  %s1 = inlined_call_operand.vmem [shape: bf16[256,64], index: 1, kind: input, shape index: {}]
  %s2 = inlined_call_operand.vmem [shape: f32[1,64], index: 2, kind: input, shape index: {}]
  %s3 = inlined_call_operand.vmem [shape: f32[1,64], index: 3, kind: input, shape index: {}]
  %s4 = inlined_call_operand.vmem [shape: f32[128,64], index: 4, kind: output, shape index: {}]
  %s5 = sld [smem:[#allocation0]]
  $region98: #{encoder_forward.4} parent=0
    _
  %s7 = ssub.s32 1, %s5
  %s8 = scalar_select 0, %s7, %s5
  $region1: #{encoder_forward.4} parent=0
    #allocation3 [shape = 'u8[65536]{0}', space=vmem, size = 0x10000, scoped, tag = 'input window, operand 0']
    loop: start=0, step=1, limit=4
    $region2: #{encoder_forward.4} parent=1 // loop_pre_header
      _
    $region3: #{encoder_forward.4} parent=1 // loop_header
      %s10 = sphi 0, %s14
      %p11 = scmp.ge.s32.totalorder %s10, 4
      %s20 = sphi 0, %s22
      %s23 = sphi 0, %s20
      %s24 = sphi 0, %s23
      %s40 = sphi 0, %s24
      %s46 = sphi 0, %s48
      %s49 = sphi 0, %s46
      %s50 = sphi 0, %s49
      %s66 = sphi 0, %s50
      %s70 = sphi 0, %s70
      %s72 = sphi 0, %s70
      %s73 = sphi 0, %s72
      %s87 = sphi 0, %s73
      %s91 = sphi 0, %s91
      %s93 = sphi 0, %s91
      %s94 = sphi 0, %s93
      %s108 = sphi 0, %s94
      %s112 = sphi 0, %s112
      %s114 = sphi 0, %s112
      %s115 = sphi 0, %s114
      %s129 = sphi 0, %s115
    $region4: #{encoder_forward.4} parent=1 // loop_header_branch
      %13 = sbr.rel (%p11) target = $region8
    $region5: #{encoder_forward.4} parent=1 // loop_body
      %s15 = ssub.s32 %s10, 1
      %s16 = ssub.s32 %s10, 2
      %s17 = sadd.s32 %s10, 1
      %s18 = ssub.s32 %s10, %s17
      %p19 = scmp.eq.s32.totalorder %s18, 0
      %s21 = sadd.s32 %s20, 1
      %s22 = scalar_select %p19, %s20, %s21
      %p25 = pneg %p19
      %p26 = scmp.eq.s32.totalorder %s10, 1
      %p27 = por %p25, %p26
      %p28 = scmp.ne.s32.totalorder %s20, %s23
      %p29 = scmp.eq.s32.totalorder %s10, 0
      %p30 = por %p28, %p29
      %p31 = scmp.ne.s32.totalorder %s20, %s23
      %p32 = scmp.eq.s32.totalorder %s15, 1
      %p33 = por %p31, %p32
      %p34 = scmp.ne.s32.totalorder %s23, %s24
      %p35 = scmp.eq.s32.totalorder %s15, 0
      %p36 = por %p34, %p35
      %p37 = scmp.ne.s32.totalorder %s23, %s24
      %p38 = scmp.eq.s32.totalorder %s16, 1
      %p39 = por %p37, %p38
      %p41 = scmp.ne.s32.totalorder %s24, %s40
      %p42 = scmp.eq.s32.totalorder %s16, 0
      %p43 = por %p41, %p42
      %s44 = ssub.s32 %s10, %s17
      %p45 = scmp.eq.s32.totalorder %s44, 0
      %s47 = sadd.s32 %s46, 1
      %s48 = scalar_select %p45, %s46, %s47
      %p51 = pneg %p45
      %p52 = scmp.eq.s32.totalorder %s10, 1
      %p53 = por %p51, %p52
      %p54 = scmp.ne.s32.totalorder %s46, %s49
      %p55 = scmp.eq.s32.totalorder %s10, 0
      %p56 = por %p54, %p55
      %p57 = scmp.ne.s32.totalorder %s46, %s49
      %p58 = scmp.eq.s32.totalorder %s15, 1
      %p59 = por %p57, %p58
      %p60 = scmp.ne.s32.totalorder %s49, %s50
      %p61 = scmp.eq.s32.totalorder %s15, 0
      %p62 = por %p60, %p61
      %p63 = scmp.ne.s32.totalorder %s49, %s50
      %p64 = scmp.eq.s32.totalorder %s16, 1
      %p65 = por %p63, %p64
      %p67 = scmp.ne.s32.totalorder %s50, %s66
      %p68 = scmp.eq.s32.totalorder %s16, 0
      %p69 = por %p67, %p68
      %s71 = sadd.s32 %s70, 1
      %p74 = scmp.eq.s32.totalorder %s10, 1
      %p75 = scmp.ne.s32.totalorder %s70, %s72
      %p76 = scmp.eq.s32.totalorder %s10, 0
      %p77 = por %p75, %p76
      %p78 = scmp.ne.s32.totalorder %s70, %s72
      %p79 = scmp.eq.s32.totalorder %s15, 1
      %p80 = por %p78, %p79
      %p81 = scmp.ne.s32.totalorder %s72, %s73
      %p82 = scmp.eq.s32.totalorder %s15, 0
      %p83 = por %p81, %p82
      %p84 = scmp.ne.s32.totalorder %s72, %s73
      %p85 = scmp.eq.s32.totalorder %s16, 1
      %p86 = por %p84, %p85
      %p88 = scmp.ne.s32.totalorder %s73, %s87
      %p89 = scmp.eq.s32.totalorder %s16, 0
      %p90 = por %p88, %p89
      %s92 = sadd.s32 %s91, 1
      %p95 = scmp.eq.s32.totalorder %s10, 1
      %p96 = scmp.ne.s32.totalorder %s91, %s93
      %p97 = scmp.eq.s32.totalorder %s10, 0
      %p98 = por %p96, %p97
      %p99 = scmp.ne.s32.totalorder %s91, %s93
      %p100 = scmp.eq.s32.totalorder %s15, 1
      %p101 = por %p99, %p100
      %p102 = scmp.ne.s32.totalorder %s93, %s94
      %p103 = scmp.eq.s32.totalorder %s15, 0
      %p104 = por %p102, %p103
      %p105 = scmp.ne.s32.totalorder %s93, %s94
      %p106 = scmp.eq.s32.totalorder %s16, 1
      %p107 = por %p105, %p106
      %p109 = scmp.ne.s32.totalorder %s94, %s108
      %p110 = scmp.eq.s32.totalorder %s16, 0
      %p111 = por %p109, %p110
      %s113 = sadd.s32 %s112, 1
      %p116 = scmp.eq.s32.totalorder %s10, 1
      %p117 = scmp.ne.s32.totalorder %s112, %s114
      %p118 = scmp.eq.s32.totalorder %s10, 0
      %p119 = por %p117, %p118
      %p120 = scmp.ne.s32.totalorder %s112, %s114
      %p121 = scmp.eq.s32.totalorder %s15, 1
      %p122 = por %p120, %p121
      %p123 = scmp.ne.s32.totalorder %s114, %s115
      %p124 = scmp.eq.s32.totalorder %s15, 0
      %p125 = por %p123, %p124
      %p126 = scmp.ne.s32.totalorder %s114, %s115
      %p127 = scmp.eq.s32.totalorder %s16, 1
      %p128 = por %p126, %p127
      %p130 = scmp.ne.s32.totalorder %s115, %s129
      %p131 = scmp.eq.s32.totalorder %s16, 0
      %p132 = por %p130, %p131
      %p133 = scmp.le.s32.totalorder 1, %s10
      %p134 = scmp.lt.s32.totalorder %s10, 3
      %p135 = pnand %p133, %p134
      %p136 = pneg %p135
      // Predicated region
      $region9: #{encoder_forward.4} parent=5 // pred_check
        _
      $region10: #{encoder_forward.4} parent=5 // pred_check_branch
        %138 = sbr.rel (%p135) target = $region12
      $region11: #{encoder_forward.4} parent=5 // pred_region
        %s139 = ssub.s32 %s10, 1
        // Predicated region
        $region13: #{encoder_forward.4} parent=11 // pred_check
          %p140 = pneg %p83
        $region14: #{encoder_forward.4} parent=11 // pred_check_branch
          %142 = sbr.rel (%p140) target = $region16
        $region15: #{encoder_forward.4} parent=11 // pred_region
          _
        $region16: #{encoder_forward.4} parent=11 // pred_fallthru
          _
        // Predicated region
        $region17: #{encoder_forward.4} parent=11 // pred_check
          %p143 = pneg %p104
        $region18: #{encoder_forward.4} parent=11 // pred_check_branch
          %145 = sbr.rel (%p143) target = $region20
        $region19: #{encoder_forward.4} parent=11 // pred_region
          _
        $region20: #{encoder_forward.4} parent=11 // pred_fallthru
          _
      $region12: #{encoder_forward.4} parent=5 // pred_fallthru
        _
      %p146 = scmp.lt.s32.totalorder %s10, 2
      // Predicated region
      $region21: #{encoder_forward.4} parent=5 // pred_check
        %p147 = pneg %p146
      $region22: #{encoder_forward.4} parent=5 // pred_check_branch
        %149 = sbr.rel (%p147) target = $region24
      $region23: #{encoder_forward.4} parent=5 // pred_region
        // Predicated region
        $region25: #{encoder_forward.4} parent=23 // pred_check
          %p150 = pneg %p30
        $region26: #{encoder_forward.4} parent=23 // pred_check_branch
          %152 = sbr.rel (%p150) target = $region28
        $region27: #{encoder_forward.4} parent=23 // pred_region
          %s153 = sand.u32 %s20, 1
          %s154 = sand.u32 %s20, 1
          %s155 = smul.addr %s154, 64
          %s156 = scalar_lea.vmem [#allocation3], %s155
          %s157 = smul.addr %s10, 4
          %s158 = scalar_lea.vmem %s0, %s157
          // Predicated region
          $region29: #{encoder_forward.4} parent=27 // pred_check
            _
          $region30: #{encoder_forward.4} parent=27 // pred_check_branch
            %160 = sbr.rel (0) target = $region32
          $region31: #{encoder_forward.4} parent=27 // pred_region
            // Predicated region
            $region33: #{encoder_forward.4} parent=31 // pred_check
              _
            $region34: #{encoder_forward.4} parent=31 // pred_check_branch
              %162 = sbr.rel target = $region36
            $region35: #{encoder_forward.4} parent=31 // pred_region
              // Predicated region
              $region48: #{encoder_forward.4} parent=35 // pred_check
                _
              $region49: #{encoder_forward.4} parent=35 // pred_check_branch
                %207 = sbr.rel (0) target = $region51
              $region50: #{encoder_forward.4} parent=35 // pred_region
                loop: start=0, step=1, limit=1
                $region52: #{encoder_forward.4} parent=50 // loop_pre_header
                  _
                $region53: #{encoder_forward.4} parent=50 // loop_header
                  %s209 = sphi 0, %s213
                  %p210 = scmp.ge.s32.totalorder %s209, 1
                  %s214 = sphi %s158, %s158
                  %s215 = sphi %s156, %s156
                $region54: #{encoder_forward.4} parent=50 // loop_header_branch
                  %212 = sbr.rel (%p210) target = $region58
                $region55: #{encoder_forward.4} parent=50 // loop_body
                  _
                $region56: #{encoder_forward.4} parent=50 // loop_footer
                  %s213 = sadd.s32 1, %s209
                $region57: #{encoder_forward.4} parent=50 // loop_footer_branch
                  %208 = sbr.rel target = $region53
                $region58: #{encoder_forward.4} parent=50 // loop_exit
                  _
                loop: start=0, step=1, limit=1
                $region59: #{encoder_forward.4} parent=50 // loop_pre_header
                  _
                $region60: #{encoder_forward.4} parent=50 // loop_header
                  %s218 = sphi 0, %s222
                  %p219 = scmp.ge.s32.totalorder %s218, 1
                  %s223 = sphi %s158, %s158
                  %s224 = sphi %s156, %s156
                $region61: #{encoder_forward.4} parent=50 // loop_header_branch
                  %221 = sbr.rel (%p219) target = $region65
                $region62: #{encoder_forward.4} parent=50 // loop_body
                  %v225 = vld [vmem:[%s223] sm:$0xf]
                  %226 = vst [vmem:[%s224] sm:$0xf] %v225
                  %v227 = vld [vmem:[%s223 + $0x8] sm:$0xf]
                  %228 = vst [vmem:[%s224 + $0x4] sm:$0xf] %v227
                  %v229 = vld [vmem:[%s223 + $0x10] sm:$0xf]
                  %230 = vst [vmem:[%s224 + $0x8] sm:$0xf] %v229
                  %v231 = vld [vmem:[%s223 + $0x18] sm:$0xf]
                  %232 = vst [vmem:[%s224 + $0xc] sm:$0xf] %v231
                  %v233 = vld [vmem:[%s223 + $0x20] sm:$0xf]
                  %234 = vst [vmem:[%s224 + $0x10] sm:$0xf] %v233
                  %v235 = vld [vmem:[%s223 + $0x28] sm:$0xf]
                  %236 = vst [vmem:[%s224 + $0x14] sm:$0xf] %v235
                  %v237 = vld [vmem:[%s223 + $0x30] sm:$0xf]
                  %238 = vst [vmem:[%s224 + $0x18] sm:$0xf] %v237
                  %v239 = vld [vmem:[%s223 + $0x38] sm:$0xf]
                  %240 = vst [vmem:[%s224 + $0x1c] sm:$0xf] %v239
                  %v241 = vld [vmem:[%s223 + $0x40] sm:$0xf]
                  %242 = vst [vmem:[%s224 + $0x20] sm:$0xf] %v241
                  %v243 = vld [vmem:[%s223 + $0x48] sm:$0xf]
                  %244 = vst [vmem:[%s224 + $0x24] sm:$0xf] %v243
                  %v245 = vld [vmem:[%s223 + $0x50] sm:$0xf]
                  %246 = vst [vmem:[%s224 + $0x28] sm:$0xf] %v245
                  %v247 = vld [vmem:[%s223 + $0x58] sm:$0xf]
                  %248 = vst [vmem:[%s224 + $0x2c] sm:$0xf] %v247
                  %v249 = vld [vmem:[%s223 + $0x60] sm:$0xf]
                  %250 = vst [vmem:[%s224 + $0x30] sm:$0xf] %v249
                  %v251 = vld [vmem:[%s223 + $0x68] sm:$0xf]
                  %252 = vst [vmem:[%s224 + $0x34] sm:$0xf] %v251
                  %v253 = vld [vmem:[%s223 + $0x70] sm:$0xf]
                  %254 = vst [vmem:[%s224 + $0x38] sm:$0xf] %v253
                  %v255 = vld [vmem:[%s223 + $0x78] sm:$0xf]
                  %256 = vst [vmem:[%s224 + $0x3c] sm:$0xf] %v255
                $region63: #{encoder_forward.4} parent=50 // loop_footer
                  %s222 = sadd.s32 1, %s218
                $region64: #{encoder_forward.4} parent=50 // loop_footer_branch
                  %217 = sbr.rel target = $region60
                $region65: #{encoder_forward.4} parent=50 // loop_exit
                  _
              $region51: #{encoder_forward.4} parent=35 // pred_fallthru
                _
            $region36: #{encoder_forward.4} parent=31 // pred_fallthru
              _
            // Predicated region
            $region37: #{encoder_forward.4} parent=31 // pred_check
              _
            $region38: #{encoder_forward.4} parent=31 // pred_check_branch
              %164 = sbr.rel (0) target = $region40
            $region39: #{encoder_forward.4} parent=31 // pred_region
              loop: start=0, step=1, limit=1
              $region41: #{encoder_forward.4} parent=39 // loop_pre_header
                _
              $region42: #{encoder_forward.4} parent=39 // loop_header
                %s167 = sphi 0, %s171
                %p168 = scmp.ge.s32.totalorder %s167, 1
                %s172 = sphi %s158, %s158
                %s173 = sphi %s156, %s156
              $region43: #{encoder_forward.4} parent=39 // loop_header_branch
                %170 = sbr.rel (%p168) target = $region47
              $region44: #{encoder_forward.4} parent=39 // loop_body
                %v174 = vld [vmem:[%s172] sm:$0xf]
                %175 = vst [vmem:[%s173] sm:$0xf] %v174
                %v176 = vld [vmem:[%s172 + $0x8] sm:$0xf]
                %177 = vst [vmem:[%s173 + $0x4] sm:$0xf] %v176
                %v178 = vld [vmem:[%s172 + $0x10] sm:$0xf]
                %179 = vst [vmem:[%s173 + $0x8] sm:$0xf] %v178
                %v180 = vld [vmem:[%s172 + $0x18] sm:$0xf]
                %181 = vst [vmem:[%s173 + $0xc] sm:$0xf] %v180
                %v182 = vld [vmem:[%s172 + $0x20] sm:$0xf]
                %183 = vst [vmem:[%s173 + $0x10] sm:$0xf] %v182
                %v184 = vld [vmem:[%s172 + $0x28] sm:$0xf]
                %185 = vst [vmem:[%s173 + $0x14] sm:$0xf] %v184
                %v186 = vld [vmem:[%s172 + $0x30] sm:$0xf]
                %187 = vst [vmem:[%s173 + $0x18] sm:$0xf] %v186
                %v188 = vld [vmem:[%s172 + $0x38] sm:$0xf]
                %189 = vst [vmem:[%s173 + $0x1c] sm:$0xf] %v188
                %v190 = vld [vmem:[%s172 + $0x40] sm:$0xf]
                %191 = vst [vmem:[%s173 + $0x20] sm:$0xf] %v190
                %v192 = vld [vmem:[%s172 + $0x48] sm:$0xf]
                %193 = vst [vmem:[%s173 + $0x24] sm:$0xf] %v192
                %v194 = vld [vmem:[%s172 + $0x50] sm:$0xf]
                %195 = vst [vmem:[%s173 + $0x28] sm:$0xf] %v194
                %v196 = vld [vmem:[%s172 + $0x58] sm:$0xf]
                %197 = vst [vmem:[%s173 + $0x2c] sm:$0xf] %v196
                %v198 = vld [vmem:[%s172 + $0x60] sm:$0xf]
                %199 = vst [vmem:[%s173 + $0x30] sm:$0xf] %v198
                %v200 = vld [vmem:[%s172 + $0x68] sm:$0xf]
                %201 = vst [vmem:[%s173 + $0x34] sm:$0xf] %v200
                %v202 = vld [vmem:[%s172 + $0x70] sm:$0xf]
                %203 = vst [vmem:[%s173 + $0x38] sm:$0xf] %v202
                %v204 = vld [vmem:[%s172 + $0x78] sm:$0xf]
                %205 = vst [vmem:[%s173 + $0x3c] sm:$0xf] %v204
              $region45: #{encoder_forward.4} parent=39 // loop_footer
                %s171 = sadd.s32 1, %s167
              $region46: #{encoder_forward.4} parent=39 // loop_footer_branch
                %166 = sbr.rel target = $region42
              $region47: #{encoder_forward.4} parent=39 // loop_exit
                _
            $region40: #{encoder_forward.4} parent=31 // pred_fallthru
              _
          $region32: #{encoder_forward.4} parent=27 // pred_fallthru
            _
          %257 = vnop
        $region28: #{encoder_forward.4} parent=23 // pred_fallthru
          _
        // Predicated region
        $region66: #{encoder_forward.4} parent=23 // pred_check
          %p258 = pneg %p56
        $region67: #{encoder_forward.4} parent=23 // pred_check_branch
          %260 = sbr.rel (%p258) target = $region69
        $region68: #{encoder_forward.4} parent=23 // pred_region
          %s261 = smul.u32 16, %s10
          %p262 = scmp.lt.s32.totalorder %s261, 31
          %s263 = scalar_select %p262, %s261, 31
          %s264 = smul.addr %s263, 4
          %s265 = scalar_lea.vmem %s1, %s264
          %s266 = smul.u32 16, %s10
        $region69: #{encoder_forward.4} parent=23 // pred_fallthru
          _
      $region24: #{encoder_forward.4} parent=5 // pred_fallthru
        _
      %p267 = scmp.le.s32.totalorder 1, %s10
      %p268 = scmp.lt.s32.totalorder %s10, 3
      %p269 = pnand %p267, %p268
      %p270 = pneg %p269
      // Predicated region
      $region70: #{encoder_forward.4} parent=5 // pred_check
        _
      $region71: #{encoder_forward.4} parent=5 // pred_check_branch
        %272 = sbr.rel (%p269) target = $region73
      $region72: #{encoder_forward.4} parent=5 // pred_region
        %s273 = ssub.s32 %s10, 1
        %s274 = sand.u32 %s23, 1
        %s275 = sand.u32 %s23, 1
        %s276 = smul.addr %s275, 64
        %s277 = scalar_lea.vmem [#allocation3], %s276
        // Predicated region
        $region74: #{encoder_forward.4} parent=72 // pred_check
          %p278 = pneg %p36
        $region75: #{encoder_forward.4} parent=72 // pred_check_branch
          %280 = sbr.rel (%p278) target = $region77
        $region76: #{encoder_forward.4} parent=72 // pred_region
          _
        $region77: #{encoder_forward.4} parent=72 // pred_fallthru
          _
        %s281 = sand.u32 %s23, 1
        %s282 = sand.u32 %s23, 1
        %s283 = smul.addr %s282, 64
        %s284 = scalar_lea.vmem [#allocation3], %s283
        %p285 = pneg %p36
        %p286 = pneg %p33
        %s287 = smul.u32 16, %s15
        %p288 = scmp.lt.s32.totalorder %s287, 31
        %s289 = scalar_select %p288, %s287, 31
        %s290 = smul.addr %s289, 4
        %s291 = scalar_lea.vmem %s1, %s290
        %p292 = pneg %p62
        %p293 = pneg %p59
        %p294 = pneg %p83
        %p295 = pneg %p80
        %p296 = pneg %p104
        %p297 = pneg %p101
        %p298 = pneg %p125
        %p299 = pneg %p122
        %s300 = smul.u32 16, %s15
        %p301 = scmp.lt.s32.totalorder %s300, 31
        %s302 = scalar_select %p301, %s300, 31
        %s303 = smul.addr %s302, 4
        %s304 = scalar_lea.vmem %s1, %s303
        %s305 = smul.u32 16, %s15
        %p307 = scmp.eq.s32.totalorder %s15, 0
        // Predicated region
        $region78: #{encoder_forward.4} parent=72 // pred_check
          %p308 = pneg %p307
        $region79: #{encoder_forward.4} parent=72 // pred_check_branch
          %310 = sbr.rel (%p308) target = $region81
        $region80: #{encoder_forward.4} parent=72 // pred_region
          %vm311 = vcmask 523264
          %312 = vst.msk [vmem:[#allocation2] sm:$0xff] %vm311, 0.0
          %313 = vst.msk [vmem:[#allocation2 + $0x8] sm:$0xff] %vm311, 0.0
          %314 = vst.msk [vmem:[#allocation2 + $0x10] sm:$0xff] %vm311, 0.0
          %315 = vst.msk [vmem:[#allocation2 + $0x18] sm:$0xff] %vm311, 0.0
          %316 = vst.msk [vmem:[#allocation2 + $0x20] sm:$0xff] %vm311, 0.0
          %317 = vst.msk [vmem:[#allocation2 + $0x28] sm:$0xff] %vm311, 0.0
          %318 = vst.msk [vmem:[#allocation2 + $0x30] sm:$0xff] %vm311, 0.0
          %319 = vst.msk [vmem:[#allocation2 + $0x38] sm:$0xff] %vm311, 0.0
          %320 = vst.msk [vmem:[#allocation2 + $0x40] sm:$0xff] %vm311, 0.0
          %321 = vst.msk [vmem:[#allocation2 + $0x48] sm:$0xff] %vm311, 0.0
          %322 = vst.msk [vmem:[#allocation2 + $0x50] sm:$0xff] %vm311, 0.0
          %323 = vst.msk [vmem:[#allocation2 + $0x58] sm:$0xff] %vm311, 0.0
          %324 = vst.msk [vmem:[#allocation2 + $0x60] sm:$0xff] %vm311, 0.0
          %325 = vst.msk [vmem:[#allocation2 + $0x68] sm:$0xff] %vm311, 0.0
          %326 = vst.msk [vmem:[#allocation2 + $0x70] sm:$0xff] %vm311, 0.0
          %327 = vst.msk [vmem:[#allocation2 + $0x78] sm:$0xff] %vm311, 0.0
        $region81: #{encoder_forward.4} parent=72 // pred_fallthru
          _
        %v328 = vld [vmem:[#allocation2] sm:$0xff]
        %v329 = vld [vmem:[#allocation2 + $0x8] sm:$0xff]
        %v330 = vld [vmem:[#allocation2 + $0x10] sm:$0xff]
        %v331 = vld [vmem:[#allocation2 + $0x18] sm:$0xff]
        %v332 = vld [vmem:[#allocation2 + $0x20] sm:$0xff]
        %v333 = vld [vmem:[#allocation2 + $0x28] sm:$0xff]
        %v334 = vld [vmem:[#allocation2 + $0x30] sm:$0xff]
        %v335 = vld [vmem:[#allocation2 + $0x38] sm:$0xff]
        %v336 = vld [vmem:[#allocation2 + $0x40] sm:$0xff]
        %v337 = vld [vmem:[#allocation2 + $0x48] sm:$0xff]
        %v338 = vld [vmem:[#allocation2 + $0x50] sm:$0xff]
        %v339 = vld [vmem:[#allocation2 + $0x58] sm:$0xff]
        %v340 = vld [vmem:[#allocation2 + $0x60] sm:$0xff]
        %v341 = vld [vmem:[#allocation2 + $0x68] sm:$0xff]
        %v342 = vld [vmem:[#allocation2 + $0x70] sm:$0xff]
        %v343 = vld [vmem:[#allocation2 + $0x78] sm:$0xff]
        %v344 = vld [vmem:[%s277] sm:$0xf]
        %v345 = vld [vmem:[%s277 + $0x4] sm:$0xf]
        %v346 = vld [vmem:[%s277 + $0x8] sm:$0xf]
        %v347 = vld [vmem:[%s277 + $0xc] sm:$0xf]
        %v348 = vld [vmem:[%s277 + $0x10] sm:$0xf]
        %v349 = vld [vmem:[%s277 + $0x14] sm:$0xf]
        %v350 = vld [vmem:[%s277 + $0x18] sm:$0xf]
        %v351 = vld [vmem:[%s277 + $0x1c] sm:$0xf]
        %v352 = vld [vmem:[%s277 + $0x20] sm:$0xf]
        %v353 = vld [vmem:[%s277 + $0x24] sm:$0xf]
        %v354 = vld [vmem:[%s277 + $0x28] sm:$0xf]
        %v355 = vld [vmem:[%s277 + $0x2c] sm:$0xf]
        %v356 = vld [vmem:[%s277 + $0x30] sm:$0xf]
        %v357 = vld [vmem:[%s277 + $0x34] sm:$0xf]
        %v358 = vld [vmem:[%s277 + $0x38] sm:$0xf]
        %v359 = vld [vmem:[%s277 + $0x3c] sm:$0xf]
        %v360 = vld [vmem:[%s304] sm:$0xf]
        %v361 = vld [vmem:[%s304 + $0x4] sm:$0xf]
        %v362 = vld [vmem:[%s304 + $0x8] sm:$0xf]
        %v363 = vld [vmem:[%s304 + $0xc] sm:$0xf]
        %v364 = vld [vmem:[%s304 + $0x10] sm:$0xf]
        %v365 = vld [vmem:[%s304 + $0x14] sm:$0xf]
        %v366 = vld [vmem:[%s304 + $0x18] sm:$0xf]
        %v367 = vld [vmem:[%s304 + $0x1c] sm:$0xf]
        %v368 = vld [vmem:[%s304 + $0x20] sm:$0xf]
        %v369 = vld [vmem:[%s304 + $0x24] sm:$0xf]
        %v370 = vld [vmem:[%s304 + $0x28] sm:$0xf]
        %v371 = vld [vmem:[%s304 + $0x2c] sm:$0xf]
        %v372 = vld [vmem:[%s304 + $0x30] sm:$0xf]
        %v373 = vld [vmem:[%s304 + $0x34] sm:$0xf]
        %v374 = vld [vmem:[%s304 + $0x38] sm:$0xf]
        %v375 = vld [vmem:[%s304 + $0x3c] sm:$0xf]
        %v392 = vunpack.c.l.b16 %v344
        %v393 = vunpack.c.l.b16 %v345
        %v394 = vunpack.c.l.b16 %v346
        %v395 = vunpack.c.l.b16 %v347
        %v396 = vunpack.c.l.b16 %v348
        %v397 = vunpack.c.l.b16 %v349
        %v398 = vunpack.c.l.b16 %v350
        %v399 = vunpack.c.l.b16 %v351
        %v400 = vunpack.c.l.b16 %v352
        %v401 = vunpack.c.l.b16 %v353
        %v402 = vunpack.c.l.b16 %v354
        %v403 = vunpack.c.l.b16 %v355
        %v404 = vunpack.c.l.b16 %v356
        %v405 = vunpack.c.l.b16 %v357
        %v406 = vunpack.c.l.b16 %v358
        %v407 = vunpack.c.l.b16 %v359
        %v408 = vpack.c.b16 %v393, %v392
        %v409 = vpack.c.b16 %v395, %v394
        %v410 = vpack.c.b16 %v397, %v396
        %v411 = vpack.c.b16 %v399, %v398
        %v412 = vpack.c.b16 %v401, %v400
        %v413 = vpack.c.b16 %v403, %v402
        %v414 = vpack.c.b16 %v405, %v404
        %v415 = vpack.c.b16 %v407, %v406
        %v440 = vunpack.c.l.b16 %v360
        %v441 = vunpack.c.l.b16 %v361
        %v442 = vunpack.c.l.b16 %v362
        %v443 = vunpack.c.l.b16 %v363
        %v444 = vunpack.c.l.b16 %v364
        %v445 = vunpack.c.l.b16 %v365
        %v446 = vunpack.c.l.b16 %v366
        %v447 = vunpack.c.l.b16 %v367
        %v448 = vunpack.c.l.b16 %v368
        %v449 = vunpack.c.l.b16 %v369
        %v450 = vunpack.c.l.b16 %v370
        %v451 = vunpack.c.l.b16 %v371
        %v452 = vunpack.c.l.b16 %v372
        %v453 = vunpack.c.l.b16 %v373
        %v454 = vunpack.c.l.b16 %v374
        %v455 = vunpack.c.l.b16 %v375
        %v456 = vpack.c.b16 %v441, %v440
        %v457 = vpack.c.b16 %v443, %v442
        %v458 = vpack.c.b16 %v445, %v444
        %v459 = vpack.c.b16 %v447, %v446
        %v460 = vpack.c.b16 %v449, %v448
        %v461 = vpack.c.b16 %v451, %v450
        %v462 = vpack.c.b16 %v453, %v452
        %v463 = vpack.c.b16 %v455, %v454
        %472 = vmatprep.subr.bf16.mxu0 0
        %473 = vmatpush1.bf16.msra.mxu0 %v456
        %474 = vmatprep.subr.bf16.mxu0 0
        %475 = vmatpush1.bf16.msra.mxu0 %v457
        %476 = vmatprep.subr.bf16.mxu0 0
        %477 = vmatpush1.bf16.msra.mxu0 %v458
        %478 = vmatprep.subr.bf16.mxu0 0
        %479 = vmatpush1.bf16.msra.mxu0 %v459
        %480 = vmatprep.subr.bf16.mxu0 0
        %481 = vmatpush1.bf16.msra.mxu0 %v460
        %482 = vmatprep.subr.bf16.mxu0 0
        %483 = vmatpush1.bf16.msra.mxu0 %v461
        %484 = vmatprep.subr.bf16.mxu0 0
        %485 = vmatpush1.bf16.msra.mxu0 %v462
        %486 = vmatprep.subr.bf16.mxu0 0
        %487 = vmatpush1.bf16.msra.mxu0 %v463
        %488 = vmatprep.subr.bf16.mxu0 0
        %489 = vmatpush1.bf16.msra.mxu0 0
        %490 = vmatprep.subr.bf16.mxu0 0
        %491 = vmatpush1.bf16.msra.mxu0 0
        %492 = vmatprep.subr.bf16.mxu0 0
        %493 = vmatpush1.bf16.msra.mxu0 0
        %494 = vmatprep.subr.bf16.mxu0 0
        %495 = vmatpush1.bf16.msra.mxu0 0
        %496 = vmatprep.subr.bf16.mxu0 0
        %497 = vmatpush1.bf16.msra.mxu0 0
        %498 = vmatprep.subr.bf16.mxu0 0
        %499 = vmatpush1.bf16.msra.mxu0 0
        %500 = vmatprep.subr.bf16.mxu0 0
        %501 = vmatpush1.bf16.msra.mxu0 0
        %502 = vmatprep.subr.bf16.mxu0 0
        %503 = vmatpush1.bf16.msra.mxu0 0
        %504 = vmatprep.mubr.bf16.mxu0 0
        %505 = vmatmul.mubr.bf16.gmra.mrb[0].mxu0 %v408
        %v506 = vpop.f32.mrb[0].mxu0
        %v507 = vadd.f32 0.0, %v506
        %v508 = vpop.f32.mrb[0].mxu0
        %v509 = vpop.f32.mrb[0].mxu0
        %v510 = vadd.f32 0.0, %v509
        %v511 = vpop.f32.mrb[0].mxu0
        %512 = vmatprep.mubr.bf16.mxu0 0
        %513 = vmatmul.mubr.bf16.gmra.mrb[0].mxu0 %v409
        %v514 = vpop.f32.mrb[0].mxu0
        %v515 = vadd.f32 0.0, %v514
        %v516 = vpop.f32.mrb[0].mxu0
        %v517 = vpop.f32.mrb[0].mxu0
        %v518 = vadd.f32 0.0, %v517
        %v519 = vpop.f32.mrb[0].mxu0
        %520 = vmatprep.mubr.bf16.mxu0 0
        %521 = vmatmul.mubr.bf16.gmra.mrb[0].mxu0 %v410
        %v522 = vpop.f32.mrb[0].mxu0
        %v523 = vadd.f32 0.0, %v522
        %v524 = vpop.f32.mrb[0].mxu0
        %v525 = vpop.f32.mrb[0].mxu0
        %v526 = vadd.f32 0.0, %v525
        %v527 = vpop.f32.mrb[0].mxu0
        %528 = vmatprep.mubr.bf16.mxu0 0
        %529 = vmatmul.mubr.bf16.gmra.mrb[0].mxu0 %v411
        %v530 = vpop.f32.mrb[0].mxu0
        %v531 = vadd.f32 0.0, %v530
        %v532 = vpop.f32.mrb[0].mxu0
        %v533 = vpop.f32.mrb[0].mxu0
        %v534 = vadd.f32 0.0, %v533
        %v535 = vpop.f32.mrb[0].mxu0
        %536 = vmatprep.mubr.bf16.mxu0 0
        %537 = vmatmul.mubr.bf16.gmra.mrb[0].mxu0 %v412
        %v538 = vpop.f32.mrb[0].mxu0
        %v539 = vadd.f32 0.0, %v538
        %v540 = vpop.f32.mrb[0].mxu0
        %v541 = vpop.f32.mrb[0].mxu0
        %v542 = vadd.f32 0.0, %v541
        %v543 = vpop.f32.mrb[0].mxu0
        %544 = vmatprep.mubr.bf16.mxu0 0
        %545 = vmatmul.mubr.bf16.gmra.mrb[0].mxu0 %v413
        %v546 = vpop.f32.mrb[0].mxu0
        %v547 = vadd.f32 0.0, %v546
        %v548 = vpop.f32.mrb[0].mxu0
        %v549 = vpop.f32.mrb[0].mxu0
        %v550 = vadd.f32 0.0, %v549
        %v551 = vpop.f32.mrb[0].mxu0
        %552 = vmatprep.mubr.bf16.mxu0 0
        %553 = vmatmul.mubr.bf16.gmra.mrb[0].mxu0 %v414
        %v554 = vpop.f32.mrb[0].mxu0
        %v555 = vadd.f32 0.0, %v554
        %v556 = vpop.f32.mrb[0].mxu0
        %v557 = vpop.f32.mrb[0].mxu0
        %v558 = vadd.f32 0.0, %v557
        %v559 = vpop.f32.mrb[0].mxu0
        %560 = vmatprep.mubr.bf16.mxu0 0
        %561 = vmatmul.mubr.bf16.gmra.mrb[0].mxu0 %v415
        %v562 = vpop.f32.mrb[0].mxu0
        %v563 = vadd.f32 0.0, %v562
        %v564 = vpop.f32.mrb[0].mxu0
        %v565 = vpop.f32.mrb[0].mxu0
        %v566 = vadd.f32 0.0, %v565
        %v567 = vpop.f32.mrb[0].mxu0
        %568 = vdwg.mxu0
        %v569 = vadd.f32 %v328, %v507
        %v570 = vadd.f32 %v329, %v510
        %v571 = vadd.f32 %v330, %v515
        %v572 = vadd.f32 %v331, %v518
        %v573 = vadd.f32 %v332, %v523
        %v574 = vadd.f32 %v333, %v526
        %v575 = vadd.f32 %v334, %v531
        %v576 = vadd.f32 %v335, %v534
        %v577 = vadd.f32 %v336, %v539
        %v578 = vadd.f32 %v337, %v542
        %v579 = vadd.f32 %v338, %v547
        %v580 = vadd.f32 %v339, %v550
        %v581 = vadd.f32 %v340, %v555
        %v582 = vadd.f32 %v341, %v558
        %v583 = vadd.f32 %v342, %v563
        %v584 = vadd.f32 %v343, %v566
        %vm585 = vcmask 523264
        %586 = vst.msk [vmem:[#allocation2] sm:$0xff] %vm585, %v569
        %587 = vst.msk [vmem:[#allocation2 + $0x8] sm:$0xff] %vm585, %v570
        %588 = vst.msk [vmem:[#allocation2 + $0x10] sm:$0xff] %vm585, %v571
        %589 = vst.msk [vmem:[#allocation2 + $0x18] sm:$0xff] %vm585, %v572
        %590 = vst.msk [vmem:[#allocation2 + $0x20] sm:$0xff] %vm585, %v573
        %591 = vst.msk [vmem:[#allocation2 + $0x28] sm:$0xff] %vm585, %v574
        %592 = vst.msk [vmem:[#allocation2 + $0x30] sm:$0xff] %vm585, %v575
        %593 = vst.msk [vmem:[#allocation2 + $0x38] sm:$0xff] %vm585, %v576
        %594 = vst.msk [vmem:[#allocation2 + $0x40] sm:$0xff] %vm585, %v577
        %595 = vst.msk [vmem:[#allocation2 + $0x48] sm:$0xff] %vm585, %v578
        %596 = vst.msk [vmem:[#allocation2 + $0x50] sm:$0xff] %vm585, %v579
        %597 = vst.msk [vmem:[#allocation2 + $0x58] sm:$0xff] %vm585, %v580
        %598 = vst.msk [vmem:[#allocation2 + $0x60] sm:$0xff] %vm585, %v581
        %599 = vst.msk [vmem:[#allocation2 + $0x68] sm:$0xff] %vm585, %v582
        %600 = vst.msk [vmem:[#allocation2 + $0x70] sm:$0xff] %vm585, %v583
        %601 = vst.msk [vmem:[#allocation2 + $0x78] sm:$0xff] %vm585, %v584
        %p602 = scmp.eq.s32.totalorder %s15, 1
        // Predicated region
        $region82: #{encoder_forward.4} parent=72 // pred_check
          %p603 = pneg %p602
        $region83: #{encoder_forward.4} parent=72 // pred_check_branch
          %605 = sbr.rel (%p603) target = $region85
        $region84: #{encoder_forward.4} parent=72 // pred_region
          %v606 = vld [vmem:[#allocation2] sm:$0xff]
          %v607 = vld [vmem:[#allocation2 + $0x8] sm:$0xff]
          %v608 = vld [vmem:[#allocation2 + $0x10] sm:$0xff]
          %v609 = vld [vmem:[#allocation2 + $0x18] sm:$0xff]
          %v610 = vld [vmem:[#allocation2 + $0x20] sm:$0xff]
          %v611 = vld [vmem:[#allocation2 + $0x28] sm:$0xff]
          %v612 = vld [vmem:[#allocation2 + $0x30] sm:$0xff]
          %v613 = vld [vmem:[#allocation2 + $0x38] sm:$0xff]
          %v614 = vld [vmem:[#allocation2 + $0x40] sm:$0xff]
          %v615 = vld [vmem:[#allocation2 + $0x48] sm:$0xff]
          %v616 = vld [vmem:[#allocation2 + $0x50] sm:$0xff]
          %v617 = vld [vmem:[#allocation2 + $0x58] sm:$0xff]
          %v618 = vld [vmem:[#allocation2 + $0x60] sm:$0xff]
          %v619 = vld [vmem:[#allocation2 + $0x68] sm:$0xff]
          %v620 = vld [vmem:[#allocation2 + $0x70] sm:$0xff]
          %v621 = vld [vmem:[#allocation2 + $0x78] sm:$0xff]
          %v622 = vsel %vm585, %v606, 0.0
          %v623 = vsel %vm585, %v607, 0.0
          %v624 = vadd.f32 %v622, %v623
          %v625 = vsel %vm585, %v608, 0.0
          %v626 = vadd.f32 %v624, %v625
          %v627 = vsel %vm585, %v609, 0.0
          %v628 = vadd.f32 %v626, %v627
          %v629 = vsel %vm585, %v610, 0.0
          %v630 = vadd.f32 %v628, %v629
          %v631 = vsel %vm585, %v611, 0.0
          %v632 = vadd.f32 %v630, %v631
          %v633 = vsel %vm585, %v612, 0.0
          %v634 = vadd.f32 %v632, %v633
          %v635 = vsel %vm585, %v613, 0.0
          %v636 = vadd.f32 %v634, %v635
          %v637 = vsel %vm585, %v614, 0.0
          %v638 = vadd.f32 %v636, %v637
          %v639 = vsel %vm585, %v615, 0.0
          %v640 = vadd.f32 %v638, %v639
          %v641 = vsel %vm585, %v616, 0.0
          %v642 = vadd.f32 %v640, %v641
          %v643 = vsel %vm585, %v617, 0.0
          %v644 = vadd.f32 %v642, %v643
          %v645 = vsel %vm585, %v618, 0.0
          %v646 = vadd.f32 %v644, %v645
          %v647 = vsel %vm585, %v619, 0.0
          %v648 = vadd.f32 %v646, %v647
          %v649 = vsel %vm585, %v620, 0.0
          %v650 = vadd.f32 %v648, %v649
          %v651 = vsel %vm585, %v621, 0.0
          %v652 = vadd.f32 %v650, %v651
          %v653 = vrot.slane %v652, 4
          %v654 = vadd.f32 %v652, %v653
          %v655 = vrot.slane %v654, 2
          %v656 = vadd.f32 %v654, %v655
          %v657 = vrot.slane %v656, 1
          %v658 = vadd.f32 %v656, %v657
          %v659 = vrcp.pop 128.0
          %v660 = vmul.f32 %v658, %v659
          %v661 = vsub.f32 %v606, %v660
          %v662 = vsub.f32 %v607, %v660
          %v663 = vsub.f32 %v608, %v660
          %v664 = vsub.f32 %v609, %v660
          %v665 = vsub.f32 %v610, %v660
          %v666 = vsub.f32 %v611, %v660
          %v667 = vsub.f32 %v612, %v660
          %v668 = vsub.f32 %v613, %v660
          %v669 = vsub.f32 %v614, %v660
          %v670 = vsub.f32 %v615, %v660
          %v671 = vsub.f32 %v616, %v660
          %v672 = vsub.f32 %v617, %v660
          %v673 = vsub.f32 %v618, %v660
          %v674 = vsub.f32 %v619, %v660
          %v675 = vsub.f32 %v620, %v660
          %v676 = vsub.f32 %v621, %v660
          %v677 = vmul.f32 %v661, %v661
          %v678 = vmul.f32 %v662, %v662
          %v679 = vmul.f32 %v663, %v663
          %v680 = vmul.f32 %v664, %v664
          %v681 = vmul.f32 %v665, %v665
          %v682 = vmul.f32 %v666, %v666
          %v683 = vmul.f32 %v667, %v667
          %v684 = vmul.f32 %v668, %v668
          %v685 = vmul.f32 %v669, %v669
          %v686 = vmul.f32 %v670, %v670
          %v687 = vmul.f32 %v671, %v671
          %v688 = vmul.f32 %v672, %v672
          %v689 = vmul.f32 %v673, %v673
          %v690 = vmul.f32 %v674, %v674
          %v691 = vmul.f32 %v675, %v675
          %v692 = vmul.f32 %v676, %v676
          %v693 = vsel %vm585, %v677, 0.0
          %v694 = vsel %vm585, %v678, 0.0
          %v695 = vadd.f32 %v693, %v694
          %v696 = vsel %vm585, %v679, 0.0
          %v697 = vadd.f32 %v695, %v696
          %v698 = vsel %vm585, %v680, 0.0
          %v699 = vadd.f32 %v697, %v698
          %v700 = vsel %vm585, %v681, 0.0
          %v701 = vadd.f32 %v699, %v700
          %v702 = vsel %vm585, %v682, 0.0
          %v703 = vadd.f32 %v701, %v702
          %v704 = vsel %vm585, %v683, 0.0
          %v705 = vadd.f32 %v703, %v704
          %v706 = vsel %vm585, %v684, 0.0
          %v707 = vadd.f32 %v705, %v706
          %v708 = vsel %vm585, %v685, 0.0
          %v709 = vadd.f32 %v707, %v708
          %v710 = vsel %vm585, %v686, 0.0
          %v711 = vadd.f32 %v709, %v710
          %v712 = vsel %vm585, %v687, 0.0
          %v713 = vadd.f32 %v711, %v712
          %v714 = vsel %vm585, %v688, 0.0
          %v715 = vadd.f32 %v713, %v714
          %v716 = vsel %vm585, %v689, 0.0
          %v717 = vadd.f32 %v715, %v716
          %v718 = vsel %vm585, %v690, 0.0
          %v719 = vadd.f32 %v717, %v718
          %v720 = vsel %vm585, %v691, 0.0
          %v721 = vadd.f32 %v719, %v720
          %v722 = vsel %vm585, %v692, 0.0
          %v723 = vadd.f32 %v721, %v722
          %v724 = vrot.slane %v723, 4
          %v725 = vadd.f32 %v723, %v724
          %v726 = vrot.slane %v725, 2
          %v727 = vadd.f32 %v725, %v726
          %v728 = vrot.slane %v727, 1
          %v729 = vadd.f32 %v727, %v728
          %v730 = vmul.f32 %v729, %v659
          %v731 = vmax.f32 %v730, 0.0
          %v732 = vld [vmem:[%s2] sm:$0x1]
          %v734 = vlaneseq
          %v735 = vshrl.u32 %v734, 7
          %v736 = vsub.s32 0, %v735
          %v737 = vrot.slane %v732, %v736
          %v739 = vmul.f32 %v737, %v661
          %v740 = vmul.f32 %v737, %v662
          %v741 = vmul.f32 %v737, %v663
          %v742 = vmul.f32 %v737, %v664
          %v743 = vmul.f32 %v737, %v665
          %v744 = vmul.f32 %v737, %v666
          %v745 = vmul.f32 %v737, %v667
          %v746 = vmul.f32 %v737, %v668
          %v747 = vmul.f32 %v737, %v669
          %v748 = vmul.f32 %v737, %v670
          %v749 = vmul.f32 %v737, %v671
          %v750 = vmul.f32 %v737, %v672
          %v751 = vmul.f32 %v737, %v673
          %v752 = vmul.f32 %v737, %v674
          %v753 = vmul.f32 %v737, %v675
          %v754 = vmul.f32 %v737, %v676
          %v755 = vadd.f32 %v731, 1e-05
          %v756 = vrsqrt.pop %v755
          %v757 = vmul.f32 %v739, %v756
          %v758 = vmul.f32 %v740, %v756
          %v759 = vmul.f32 %v741, %v756
          %v760 = vmul.f32 %v742, %v756
          %v761 = vmul.f32 %v743, %v756
          %v762 = vmul.f32 %v744, %v756
          %v763 = vmul.f32 %v745, %v756
          %v764 = vmul.f32 %v746, %v756
          %v765 = vmul.f32 %v747, %v756
          %v766 = vmul.f32 %v748, %v756
          %v767 = vmul.f32 %v749, %v756
          %v768 = vmul.f32 %v750, %v756
          %v769 = vmul.f32 %v751, %v756
          %v770 = vmul.f32 %v752, %v756
          %v771 = vmul.f32 %v753, %v756
          %v772 = vmul.f32 %v754, %v756
          %v773 = vld [vmem:[%s3] sm:$0x1]
          %v775 = vlaneseq
          %v776 = vshrl.u32 %v775, 7
          %v777 = vsub.s32 0, %v776
          %v778 = vrot.slane %v773, %v777
          %v780 = vadd.f32 %v757, %v778
          %v781 = vadd.f32 %v758, %v778
          %v782 = vadd.f32 %v759, %v778
          %v783 = vadd.f32 %v760, %v778
          %v784 = vadd.f32 %v761, %v778
          %v785 = vadd.f32 %v762, %v778
          %v786 = vadd.f32 %v763, %v778
          %v787 = vadd.f32 %v764, %v778
          %v788 = vadd.f32 %v765, %v778
          %v789 = vadd.f32 %v766, %v778
          %v790 = vadd.f32 %v767, %v778
          %v791 = vadd.f32 %v768, %v778
          %v792 = vadd.f32 %v769, %v778
          %v793 = vadd.f32 %v770, %v778
          %v794 = vadd.f32 %v771, %v778
          %v795 = vadd.f32 %v772, %v778
          %v796 = vmax.f32 %v780, 0.0
          %v797 = vmax.f32 %v781, 0.0
          %v798 = vmax.f32 %v782, 0.0
          %v799 = vmax.f32 %v783, 0.0
          %v800 = vmax.f32 %v784, 0.0
          %v801 = vmax.f32 %v785, 0.0
          %v802 = vmax.f32 %v786, 0.0
          %v803 = vmax.f32 %v787, 0.0
          %v804 = vmax.f32 %v788, 0.0
          %v805 = vmax.f32 %v789, 0.0
          %v806 = vmax.f32 %v790, 0.0
          %v807 = vmax.f32 %v791, 0.0
          %v808 = vmax.f32 %v792, 0.0
          %v809 = vmax.f32 %v793, 0.0
          %v810 = vmax.f32 %v794, 0.0
          %v811 = vmax.f32 %v795, 0.0
          %812 = vst.msk [vmem:[%s4] sm:$0xff] %vm585, %v796
          %813 = vst.msk [vmem:[%s4 + $0x8] sm:$0xff] %vm585, %v797
          %814 = vst.msk [vmem:[%s4 + $0x10] sm:$0xff] %vm585, %v798
          %815 = vst.msk [vmem:[%s4 + $0x18] sm:$0xff] %vm585, %v799
          %816 = vst.msk [vmem:[%s4 + $0x20] sm:$0xff] %vm585, %v800
          %817 = vst.msk [vmem:[%s4 + $0x28] sm:$0xff] %vm585, %v801
          %818 = vst.msk [vmem:[%s4 + $0x30] sm:$0xff] %vm585, %v802
          %819 = vst.msk [vmem:[%s4 + $0x38] sm:$0xff] %vm585, %v803
          %820 = vst.msk [vmem:[%s4 + $0x40] sm:$0xff] %vm585, %v804
          %821 = vst.msk [vmem:[%s4 + $0x48] sm:$0xff] %vm585, %v805
          %822 = vst.msk [vmem:[%s4 + $0x50] sm:$0xff] %vm585, %v806
          %823 = vst.msk [vmem:[%s4 + $0x58] sm:$0xff] %vm585, %v807
          %824 = vst.msk [vmem:[%s4 + $0x60] sm:$0xff] %vm585, %v808
          %825 = vst.msk [vmem:[%s4 + $0x68] sm:$0xff] %vm585, %v809
          %826 = vst.msk [vmem:[%s4 + $0x70] sm:$0xff] %vm585, %v810
          %827 = vst.msk [vmem:[%s4 + $0x78] sm:$0xff] %vm585, %v811
        $region85: #{encoder_forward.4} parent=72 // pred_fallthru
          _
        // Predicated region
        $region86: #{encoder_forward.4} parent=72 // pred_check
          %p828 = pneg %p122
        $region87: #{encoder_forward.4} parent=72 // pred_check_branch
          %830 = sbr.rel (%p828) target = $region89
        $region88: #{encoder_forward.4} parent=72 // pred_region
          _
        $region89: #{encoder_forward.4} parent=72 // pred_fallthru
          _
        // Predicated region
        $region90: #{encoder_forward.4} parent=72 // pred_check
          %p831 = pneg %p122
        $region91: #{encoder_forward.4} parent=72 // pred_check_branch
          %833 = sbr.rel (%p831) target = $region93
        $region92: #{encoder_forward.4} parent=72 // pred_region
          _
        $region93: #{encoder_forward.4} parent=72 // pred_fallthru
          _
      $region73: #{encoder_forward.4} parent=5 // pred_fallthru
        _
      %p834 = scmp.le.s32.totalorder 2, %s10
      // Predicated region
      $region94: #{encoder_forward.4} parent=5 // pred_check
        %p835 = pneg %p834
      $region95: #{encoder_forward.4} parent=5 // pred_check_branch
        %837 = sbr.rel (%p835) target = $region97
      $region96: #{encoder_forward.4} parent=5 // pred_region
        %s838 = ssub.s32 %s10, 2
      $region97: #{encoder_forward.4} parent=5 // pred_fallthru
        _
    $region6: #{encoder_forward.4} parent=1 // loop_footer
      %s14 = sadd.s32 1, %s10
    $region7: #{encoder_forward.4} parent=1 // loop_footer_branch
      %9 = sbr.rel target = $region3
    $region8: #{encoder_forward.4} parent=1 // loop_exit
      _

// kernel: encoder_forward.6
$region0: #{encoder_forward.6}
  #allocation0 [shape = 'u32[]', space=smem, size = 0x4, offset = 0x4, fixed_abs, tag = 'smem constant byte address 0x4 - core index']
  #allocation1 [shape = 'u32[144,128]{1,0:T(1,128)}', space=vmem, size = 0x12000, scoped, tag = 'internal scratch']
  #allocation2 [shape = 'f32[32,64]{1,0:T(8,128)}', space=vmem, size = 0x4000, scoped, tag = 'scratch operand']
  %s0 = inlined_call_operand.vmem [shape: bf16[32,640], index: 0, kind: input, shape index: {}]
  %s1 = inlined_call_operand.vmem [shape: bf16[640,64], index: 1, kind: input, shape index: {}]
  %s2 = inlined_call_operand.vmem [shape: f32[32,64], index: 2, kind: input, shape index: {}]
  %s3 = inlined_call_operand.vmem [shape: f32[1,64], index: 3, kind: input, shape index: {}]
  %s4 = inlined_call_operand.vmem [shape: f32[1,64], index: 4, kind: input, shape index: {}]
  %s5 = inlined_call_operand.vmem [shape: f32[32,64], index: 5, kind: output, shape index: {}]
  %s6 = sld [smem:[#allocation0]]
  $region102: #{encoder_forward.6} parent=0
    _
  %s8 = ssub.s32 1, %s6
  %s9 = scalar_select 0, %s8, %s6
  $region1: #{encoder_forward.6} parent=0
    #allocation3 [shape = 'u8[16384]{0}', space=vmem, size = 0x4000, scoped, tag = 'input window, operand 0']
    loop: start=0, step=1, limit=7
    $region2: #{encoder_forward.6} parent=1 // loop_pre_header
      _
    $region3: #{encoder_forward.6} parent=1 // loop_header
      %s11 = sphi 0, %s15
      %p12 = scmp.ge.s32.totalorder %s11, 7
      %s21 = sphi 0, %s23
      %s24 = sphi 0, %s21
      %s25 = sphi 0, %s24
      %s41 = sphi 0, %s25
      %s47 = sphi 0, %s49
      %s50 = sphi 0, %s47
      %s51 = sphi 0, %s50
      %s67 = sphi 0, %s51
      %s71 = sphi 0, %s71
      %s73 = sphi 0, %s71
      %s74 = sphi 0, %s73
      %s88 = sphi 0, %s74
      %s92 = sphi 0, %s92
      %s94 = sphi 0, %s92
      %s95 = sphi 0, %s94
      %s109 = sphi 0, %s95
      %s113 = sphi 0, %s113
      %s115 = sphi 0, %s113
      %s116 = sphi 0, %s115
      %s130 = sphi 0, %s116
      %s134 = sphi 0, %s134
      %s136 = sphi 0, %s134
      %s137 = sphi 0, %s136
      %s151 = sphi 0, %s137
    $region4: #{encoder_forward.6} parent=1 // loop_header_branch
      %14 = sbr.rel (%p12) target = $region8
    $region5: #{encoder_forward.6} parent=1 // loop_body
      %s16 = ssub.s32 %s11, 1
      %s17 = ssub.s32 %s11, 2
      %s18 = sadd.s32 %s11, 1
      %s19 = ssub.s32 %s11, %s18
      %p20 = scmp.eq.s32.totalorder %s19, 0
      %s22 = sadd.s32 %s21, 1
      %s23 = scalar_select %p20, %s21, %s22
      %p26 = pneg %p20
      %p27 = scmp.eq.s32.totalorder %s11, 4
      %p28 = por %p26, %p27
      %p29 = scmp.ne.s32.totalorder %s21, %s24
      %p30 = scmp.eq.s32.totalorder %s11, 0
      %p31 = por %p29, %p30
      %p32 = scmp.ne.s32.totalorder %s21, %s24
      %p33 = scmp.eq.s32.totalorder %s16, 4
      %p34 = por %p32, %p33
      %p35 = scmp.ne.s32.totalorder %s24, %s25
      %p36 = scmp.eq.s32.totalorder %s16, 0
      %p37 = por %p35, %p36
      %p38 = scmp.ne.s32.totalorder %s24, %s25
      %p39 = scmp.eq.s32.totalorder %s17, 4
      %p40 = por %p38, %p39
      %p42 = scmp.ne.s32.totalorder %s25, %s41
      %p43 = scmp.eq.s32.totalorder %s17, 0
      %p44 = por %p42, %p43
      %s45 = ssub.s32 %s11, %s18
      %p46 = scmp.eq.s32.totalorder %s45, 0
      %s48 = sadd.s32 %s47, 1
      %s49 = scalar_select %p46, %s47, %s48
      %p52 = pneg %p46
      %p53 = scmp.eq.s32.totalorder %s11, 4
      %p54 = por %p52, %p53
      %p55 = scmp.ne.s32.totalorder %s47, %s50
      %p56 = scmp.eq.s32.totalorder %s11, 0
      %p57 = por %p55, %p56
      %p58 = scmp.ne.s32.totalorder %s47, %s50
      %p59 = scmp.eq.s32.totalorder %s16, 4
      %p60 = por %p58, %p59
      %p61 = scmp.ne.s32.totalorder %s50, %s51
      %p62 = scmp.eq.s32.totalorder %s16, 0
      %p63 = por %p61, %p62
      %p64 = scmp.ne.s32.totalorder %s50, %s51
      %p65 = scmp.eq.s32.totalorder %s17, 4
      %p66 = por %p64, %p65
      %p68 = scmp.ne.s32.totalorder %s51, %s67
      %p69 = scmp.eq.s32.totalorder %s17, 0
      %p70 = por %p68, %p69
      %s72 = sadd.s32 %s71, 1
      %p75 = scmp.eq.s32.totalorder %s11, 4
      %p76 = scmp.ne.s32.totalorder %s71, %s73
      %p77 = scmp.eq.s32.totalorder %s11, 0
      %p78 = por %p76, %p77
      %p79 = scmp.ne.s32.totalorder %s71, %s73
      %p80 = scmp.eq.s32.totalorder %s16, 4
      %p81 = por %p79, %p80
      %p82 = scmp.ne.s32.totalorder %s73, %s74
      %p83 = scmp.eq.s32.totalorder %s16, 0
      %p84 = por %p82, %p83
      %p85 = scmp.ne.s32.totalorder %s73, %s74
      %p86 = scmp.eq.s32.totalorder %s17, 4
      %p87 = por %p85, %p86
      %p89 = scmp.ne.s32.totalorder %s74, %s88
      %p90 = scmp.eq.s32.totalorder %s17, 0
      %p91 = por %p89, %p90
      %s93 = sadd.s32 %s92, 1
      %p96 = scmp.eq.s32.totalorder %s11, 4
      %p97 = scmp.ne.s32.totalorder %s92, %s94
      %p98 = scmp.eq.s32.totalorder %s11, 0
      %p99 = por %p97, %p98
      %p100 = scmp.ne.s32.totalorder %s92, %s94
      %p101 = scmp.eq.s32.totalorder %s16, 4
      %p102 = por %p100, %p101
      %p103 = scmp.ne.s32.totalorder %s94, %s95
      %p104 = scmp.eq.s32.totalorder %s16, 0
      %p105 = por %p103, %p104
      %p106 = scmp.ne.s32.totalorder %s94, %s95
      %p107 = scmp.eq.s32.totalorder %s17, 4
      %p108 = por %p106, %p107
      %p110 = scmp.ne.s32.totalorder %s95, %s109
      %p111 = scmp.eq.s32.totalorder %s17, 0
      %p112 = por %p110, %p111
      %s114 = sadd.s32 %s113, 1
      %p117 = scmp.eq.s32.totalorder %s11, 4
      %p118 = scmp.ne.s32.totalorder %s113, %s115
      %p119 = scmp.eq.s32.totalorder %s11, 0
      %p120 = por %p118, %p119
      %p121 = scmp.ne.s32.totalorder %s113, %s115
      %p122 = scmp.eq.s32.totalorder %s16, 4
      %p123 = por %p121, %p122
      %p124 = scmp.ne.s32.totalorder %s115, %s116
      %p125 = scmp.eq.s32.totalorder %s16, 0
      %p126 = por %p124, %p125
      %p127 = scmp.ne.s32.totalorder %s115, %s116
      %p128 = scmp.eq.s32.totalorder %s17, 4
      %p129 = por %p127, %p128
      %p131 = scmp.ne.s32.totalorder %s116, %s130
      %p132 = scmp.eq.s32.totalorder %s17, 0
      %p133 = por %p131, %p132
      %s135 = sadd.s32 %s134, 1
      %p138 = scmp.eq.s32.totalorder %s11, 4
      %p139 = scmp.ne.s32.totalorder %s134, %s136
      %p140 = scmp.eq.s32.totalorder %s11, 0
      %p141 = por %p139, %p140
      %p142 = scmp.ne.s32.totalorder %s134, %s136
      %p143 = scmp.eq.s32.totalorder %s16, 4
      %p144 = por %p142, %p143
      %p145 = scmp.ne.s32.totalorder %s136, %s137
      %p146 = scmp.eq.s32.totalorder %s16, 0
      %p147 = por %p145, %p146
      %p148 = scmp.ne.s32.totalorder %s136, %s137
      %p149 = scmp.eq.s32.totalorder %s17, 4
      %p150 = por %p148, %p149
      %p152 = scmp.ne.s32.totalorder %s137, %s151
      %p153 = scmp.eq.s32.totalorder %s17, 0
      %p154 = por %p152, %p153
      %p155 = scmp.le.s32.totalorder 1, %s11
      %p156 = scmp.lt.s32.totalorder %s11, 6
      %p157 = pnand %p155, %p156
      %p158 = pneg %p157
      // Predicated region
      $region9: #{encoder_forward.6} parent=5 // pred_check
        _
      $region10: #{encoder_forward.6} parent=5 // pred_check_branch
        %160 = sbr.rel (%p157) target = $region12
      $region11: #{encoder_forward.6} parent=5 // pred_region
        %s161 = ssub.s32 %s11, 1
        // Predicated region
        $region13: #{encoder_forward.6} parent=11 // pred_check
          %p162 = pneg %p84
        $region14: #{encoder_forward.6} parent=11 // pred_check_branch
          %164 = sbr.rel (%p162) target = $region16
        $region15: #{encoder_forward.6} parent=11 // pred_region
          _
        $region16: #{encoder_forward.6} parent=11 // pred_fallthru
          _
        // Predicated region
        $region17: #{encoder_forward.6} parent=11 // pred_check
          %p165 = pneg %p105
        $region18: #{encoder_forward.6} parent=11 // pred_check_branch
          %167 = sbr.rel (%p165) target = $region20
        $region19: #{encoder_forward.6} parent=11 // pred_region
          _
        $region20: #{encoder_forward.6} parent=11 // pred_fallthru
          _
        // Predicated region
        $region21: #{encoder_forward.6} parent=11 // pred_check
          %p168 = pneg %p126
        $region22: #{encoder_forward.6} parent=11 // pred_check_branch
          %170 = sbr.rel (%p168) target = $region24
        $region23: #{encoder_forward.6} parent=11 // pred_region
          _
        $region24: #{encoder_forward.6} parent=11 // pred_fallthru
          _
      $region12: #{encoder_forward.6} parent=5 // pred_fallthru
        _
      %p171 = scmp.lt.s32.totalorder %s11, 5
      // Predicated region
      $region25: #{encoder_forward.6} parent=5 // pred_check
        %p172 = pneg %p171
      $region26: #{encoder_forward.6} parent=5 // pred_check_branch
        %174 = sbr.rel (%p172) target = $region28
      $region27: #{encoder_forward.6} parent=5 // pred_region
        // Predicated region
        $region29: #{encoder_forward.6} parent=27 // pred_check
          %p175 = pneg %p31
        $region30: #{encoder_forward.6} parent=27 // pred_check_branch
          %177 = sbr.rel (%p175) target = $region32
        $region31: #{encoder_forward.6} parent=27 // pred_region
          %s178 = sand.u32 %s21, 1
          %s179 = sand.u32 %s21, 1
          %s180 = smul.addr %s179, 16
          %s181 = scalar_lea.vmem [#allocation3], %s180
          %s182 = smul.addr %s11, 4
          %s183 = scalar_lea.vmem %s0, %s182
          // Predicated region
          $region33: #{encoder_forward.6} parent=31 // pred_check
            _
          $region34: #{encoder_forward.6} parent=31 // pred_check_branch
            %185 = sbr.rel (0) target = $region36
          $region35: #{encoder_forward.6} parent=31 // pred_region
            // Predicated region
            $region37: #{encoder_forward.6} parent=35 // pred_check
              _
            $region38: #{encoder_forward.6} parent=35 // pred_check_branch
              %187 = sbr.rel target = $region40
            $region39: #{encoder_forward.6} parent=35 // pred_region
              // Predicated region
              $region52: #{encoder_forward.6} parent=39 // pred_check
                _
              $region53: #{encoder_forward.6} parent=39 // pred_check_branch
                %208 = sbr.rel (0) target = $region55
              $region54: #{encoder_forward.6} parent=39 // pred_region
                loop: start=0, step=1, limit=1
                $region56: #{encoder_forward.6} parent=54 // loop_pre_header
                  _
                $region57: #{encoder_forward.6} parent=54 // loop_header
                  %s210 = sphi 0, %s214
                  %p211 = scmp.ge.s32.totalorder %s210, 1
                  %s215 = sphi %s183, %s183
                  %s216 = sphi %s181, %s181
                $region58: #{encoder_forward.6} parent=54 // loop_header_branch
                  %213 = sbr.rel (%p211) target = $region62
                $region59: #{encoder_forward.6} parent=54 // loop_body
                  _
                $region60: #{encoder_forward.6} parent=54 // loop_footer
                  %s214 = sadd.s32 1, %s210
                $region61: #{encoder_forward.6} parent=54 // loop_footer_branch
                  %209 = sbr.rel target = $region57
                $region62: #{encoder_forward.6} parent=54 // loop_exit
                  _
                loop: start=0, step=1, limit=1
                $region63: #{encoder_forward.6} parent=54 // loop_pre_header
                  _
                $region64: #{encoder_forward.6} parent=54 // loop_header
                  %s219 = sphi 0, %s223
                  %p220 = scmp.ge.s32.totalorder %s219, 1
                  %s224 = sphi %s183, %s183
                  %s225 = sphi %s181, %s181
                $region65: #{encoder_forward.6} parent=54 // loop_header_branch
                  %222 = sbr.rel (%p220) target = $region69
                $region66: #{encoder_forward.6} parent=54 // loop_body
                  %v226 = vld [vmem:[%s224] sm:$0xf]
                  %227 = vst [vmem:[%s225] sm:$0xf] %v226
                  %v228 = vld [vmem:[%s224 + $0x14] sm:$0xf]
                  %229 = vst [vmem:[%s225 + $0x4] sm:$0xf] %v228
                  %v230 = vld [vmem:[%s224 + $0x28] sm:$0xf]
                  %231 = vst [vmem:[%s225 + $0x8] sm:$0xf] %v230
                  %v232 = vld [vmem:[%s224 + $0x3c] sm:$0xf]
                  %233 = vst [vmem:[%s225 + $0xc] sm:$0xf] %v232
                $region67: #{encoder_forward.6} parent=54 // loop_footer
                  %s223 = sadd.s32 1, %s219
                $region68: #{encoder_forward.6} parent=54 // loop_footer_branch
                  %218 = sbr.rel target = $region64
                $region69: #{encoder_forward.6} parent=54 // loop_exit
                  _
              $region55: #{encoder_forward.6} parent=39 // pred_fallthru
                _
            $region40: #{encoder_forward.6} parent=35 // pred_fallthru
              _
            // Predicated region
            $region41: #{encoder_forward.6} parent=35 // pred_check
              _
            $region42: #{encoder_forward.6} parent=35 // pred_check_branch
              %189 = sbr.rel (0) target = $region44
            $region43: #{encoder_forward.6} parent=35 // pred_region
              loop: start=0, step=1, limit=1
              $region45: #{encoder_forward.6} parent=43 // loop_pre_header
                _
              $region46: #{encoder_forward.6} parent=43 // loop_header
                %s192 = sphi 0, %s196
                %p193 = scmp.ge.s32.totalorder %s192, 1
                %s197 = sphi %s183, %s183
                %s198 = sphi %s181, %s181
              $region47: #{encoder_forward.6} parent=43 // loop_header_branch
                %195 = sbr.rel (%p193) target = $region51
              $region48: #{encoder_forward.6} parent=43 // loop_body
                %v199 = vld [vmem:[%s197] sm:$0xf]
                %200 = vst [vmem:[%s198] sm:$0xf] %v199
                %v201 = vld [vmem:[%s197 + $0x14] sm:$0xf]
                %202 = vst [vmem:[%s198 + $0x4] sm:$0xf] %v201
                %v203 = vld [vmem:[%s197 + $0x28] sm:$0xf]
                %204 = vst [vmem:[%s198 + $0x8] sm:$0xf] %v203
                %v205 = vld [vmem:[%s197 + $0x3c] sm:$0xf]
                %206 = vst [vmem:[%s198 + $0xc] sm:$0xf] %v205
              $region49: #{encoder_forward.6} parent=43 // loop_footer
                %s196 = sadd.s32 1, %s192
              $region50: #{encoder_forward.6} parent=43 // loop_footer_branch
                %191 = sbr.rel target = $region46
              $region51: #{encoder_forward.6} parent=43 // loop_exit
                _
            $region44: #{encoder_forward.6} parent=35 // pred_fallthru
              _
          $region36: #{encoder_forward.6} parent=31 // pred_fallthru
            _
          %234 = vnop
        $region32: #{encoder_forward.6} parent=27 // pred_fallthru
          _
        // Predicated region
        $region70: #{encoder_forward.6} parent=27 // pred_check
          %p235 = pneg %p57
        $region71: #{encoder_forward.6} parent=27 // pred_check_branch
          %237 = sbr.rel (%p235) target = $region73
        $region72: #{encoder_forward.6} parent=27 // pred_region
          %s238 = smul.u32 16, %s11
          %p239 = scmp.lt.s32.totalorder %s238, 79
          %s240 = scalar_select %p239, %s238, 79
          %s241 = smul.addr %s240, 4
          %s242 = scalar_lea.vmem %s1, %s241
          %s243 = smul.u32 16, %s11
        $region73: #{encoder_forward.6} parent=27 // pred_fallthru
          _
      $region28: #{encoder_forward.6} parent=5 // pred_fallthru
        _
      %p244 = scmp.le.s32.totalorder 1, %s11
      %p245 = scmp.lt.s32.totalorder %s11, 6
      %p246 = pnand %p244, %p245
      %p247 = pneg %p246
      // Predicated region
      $region74: #{encoder_forward.6} parent=5 // pred_check
        _
      $region75: #{encoder_forward.6} parent=5 // pred_check_branch
        %249 = sbr.rel (%p246) target = $region77
      $region76: #{encoder_forward.6} parent=5 // pred_region
        %s250 = ssub.s32 %s11, 1
        %s251 = sand.u32 %s24, 1
        %s252 = sand.u32 %s24, 1
        %s253 = smul.addr %s252, 16
        %s254 = scalar_lea.vmem [#allocation3], %s253
        // Predicated region
        $region78: #{encoder_forward.6} parent=76 // pred_check
          %p255 = pneg %p37
        $region79: #{encoder_forward.6} parent=76 // pred_check_branch
          %257 = sbr.rel (%p255) target = $region81
        $region80: #{encoder_forward.6} parent=76 // pred_region
          _
        $region81: #{encoder_forward.6} parent=76 // pred_fallthru
          _
        %s258 = sand.u32 %s24, 1
        %s259 = sand.u32 %s24, 1
        %s260 = smul.addr %s259, 16
        %s261 = scalar_lea.vmem [#allocation3], %s260
        %p262 = pneg %p37
        %p263 = pneg %p34
        %s264 = smul.u32 16, %s16
        %p265 = scmp.lt.s32.totalorder %s264, 79
        %s266 = scalar_select %p265, %s264, 79
        %s267 = smul.addr %s266, 4
        %s268 = scalar_lea.vmem %s1, %s267
        %p269 = pneg %p63
        %p270 = pneg %p60
        %p271 = pneg %p84
        %p272 = pneg %p81
        %p273 = pneg %p105
        %p274 = pneg %p102
        %p275 = pneg %p126
        %p276 = pneg %p123
        %p277 = pneg %p147
        %p278 = pneg %p144
        %s279 = smul.u32 16, %s16
        %p280 = scmp.lt.s32.totalorder %s279, 79
        %s281 = scalar_select %p280, %s279, 79
        %s282 = smul.addr %s281, 4
        %s283 = scalar_lea.vmem %s1, %s282
        %s284 = smul.u32 16, %s16
        %p286 = scmp.eq.s32.totalorder %s16, 0
        // Predicated region
        $region82: #{encoder_forward.6} parent=76 // pred_check
          %p287 = pneg %p286
        $region83: #{encoder_forward.6} parent=76 // pred_check_branch
          %289 = sbr.rel (%p287) target = $region85
        $region84: #{encoder_forward.6} parent=76 // pred_region
          %vm290 = vcmask 523264
          %291 = vst.msk [vmem:[#allocation2] sm:$0xff] %vm290, 0.0
          %292 = vst.msk [vmem:[#allocation2 + $0x8] sm:$0xff] %vm290, 0.0
          %293 = vst.msk [vmem:[#allocation2 + $0x10] sm:$0xff] %vm290, 0.0
          %294 = vst.msk [vmem:[#allocation2 + $0x18] sm:$0xff] %vm290, 0.0
        $region85: #{encoder_forward.6} parent=76 // pred_fallthru
          _
        %v295 = vld [vmem:[#allocation2] sm:$0xff]
        %v296 = vld [vmem:[#allocation2 + $0x8] sm:$0xff]
        %v297 = vld [vmem:[#allocation2 + $0x10] sm:$0xff]
        %v298 = vld [vmem:[#allocation2 + $0x18] sm:$0xff]
        %v299 = vld [vmem:[%s254] sm:$0xf]
        %v300 = vld [vmem:[%s254 + $0x4] sm:$0xf]
        %v301 = vld [vmem:[%s254 + $0x8] sm:$0xf]
        %v302 = vld [vmem:[%s254 + $0xc] sm:$0xf]
        %v303 = vld [vmem:[%s283] sm:$0xf]
        %v304 = vld [vmem:[%s283 + $0x4] sm:$0xf]
        %v305 = vld [vmem:[%s283 + $0x8] sm:$0xf]
        %v306 = vld [vmem:[%s283 + $0xc] sm:$0xf]
        %v307 = vld [vmem:[%s283 + $0x10] sm:$0xf]
        %v308 = vld [vmem:[%s283 + $0x14] sm:$0xf]
        %v309 = vld [vmem:[%s283 + $0x18] sm:$0xf]
        %v310 = vld [vmem:[%s283 + $0x1c] sm:$0xf]
        %v311 = vld [vmem:[%s283 + $0x20] sm:$0xf]
        %v312 = vld [vmem:[%s283 + $0x24] sm:$0xf]
        %v313 = vld [vmem:[%s283 + $0x28] sm:$0xf]
        %v314 = vld [vmem:[%s283 + $0x2c] sm:$0xf]
        %v315 = vld [vmem:[%s283 + $0x30] sm:$0xf]
        %v316 = vld [vmem:[%s283 + $0x34] sm:$0xf]
        %v317 = vld [vmem:[%s283 + $0x38] sm:$0xf]
        %v318 = vld [vmem:[%s283 + $0x3c] sm:$0xf]
        %v323 = vunpack.c.l.b16 %v299
        %v324 = vunpack.c.l.b16 %v300
        %v325 = vunpack.c.l.b16 %v301
        %v326 = vunpack.c.l.b16 %v302
        %v327 = vpack.c.b16 %v324, %v323
        %v328 = vpack.c.b16 %v326, %v325
        %v347 = vunpack.c.l.b16 %v303
        %v348 = vunpack.c.l.b16 %v304
        %v349 = vunpack.c.l.b16 %v305
        %v350 = vunpack.c.l.b16 %v306
        %v351 = vunpack.c.l.b16 %v307
        %v352 = vunpack.c.l.b16 %v308
        %v353 = vunpack.c.l.b16 %v309
        %v354 = vunpack.c.l.b16 %v310
        %v355 = vunpack.c.l.b16 %v311
        %v356 = vunpack.c.l.b16 %v312
        %v357 = vunpack.c.l.b16 %v313
        %v358 = vunpack.c.l.b16 %v314
        %v359 = vunpack.c.l.b16 %v315
        %v360 = vunpack.c.l.b16 %v316
        %v361 = vunpack.c.l.b16 %v317
        %v362 = vunpack.c.l.b16 %v318
        %v363 = vpack.c.b16 %v348, %v347
        %v364 = vpack.c.b16 %v350, %v349
        %v365 = vpack.c.b16 %v352, %v351
        %v366 = vpack.c.b16 %v354, %v353
        %v367 = vpack.c.b16 %v356, %v355
        %v368 = vpack.c.b16 %v358, %v357
        %v369 = vpack.c.b16 %v360, %v359
        %v370 = vpack.c.b16 %v362, %v361
        %379 = vmatprep.subr.bf16.mxu0 0
        %380 = vmatpush1.bf16.msra.mxu0 %v363
        %381 = vmatprep.subr.bf16.mxu0 0
        %382 = vmatpush1.bf16.msra.mxu0 %v364
        %383 = vmatprep.subr.bf16.mxu0 0
        %384 = vmatpush1.bf16.msra.mxu0 %v365
        %385 = vmatprep.subr.bf16.mxu0 0
        %386 = vmatpush1.bf16.msra.mxu0 %v366
        %387 = vmatprep.subr.bf16.mxu0 0
        %388 = vmatpush1.bf16.msra.mxu0 %v367
        %389 = vmatprep.subr.bf16.mxu0 0
        %390 = vmatpush1.bf16.msra.mxu0 %v368
        %391 = vmatprep.subr.bf16.mxu0 0
        %392 = vmatpush1.bf16.msra.mxu0 %v369
        %393 = vmatprep.subr.bf16.mxu0 0
        %394 = vmatpush1.bf16.msra.mxu0 %v370
        %395 = vmatprep.subr.bf16.mxu0 0
        %396 = vmatpush1.bf16.msra.mxu0 0
        %397 = vmatprep.subr.bf16.mxu0 0
        %398 = vmatpush1.bf16.msra.mxu0 0
        %399 = vmatprep.subr.bf16.mxu0 0
        %400 = vmatpush1.bf16.msra.mxu0 0
        %401 = vmatprep.subr.bf16.mxu0 0
        %402 = vmatpush1.bf16.msra.mxu0 0
        %403 = vmatprep.subr.bf16.mxu0 0
        %404 = vmatpush1.bf16.msra.mxu0 0
        %405 = vmatprep.subr.bf16.mxu0 0
        %406 = vmatpush1.bf16.msra.mxu0 0
        %407 = vmatprep.subr.bf16.mxu0 0
        %408 = vmatpush1.bf16.msra.mxu0 0
        %409 = vmatprep.subr.bf16.mxu0 0
        %410 = vmatpush1.bf16.msra.mxu0 0
        %411 = vmatprep.mubr.bf16.mxu0 0
        %412 = vmatmul.mubr.bf16.gmra.mrb[0].mxu0 %v327
        %v413 = vpop.f32.mrb[0].mxu0
        %v414 = vadd.f32 0.0, %v413
        %v415 = vpop.f32.mrb[0].mxu0
        %v416 = vpop.f32.mrb[0].mxu0
        %v417 = vadd.f32 0.0, %v416
        %v418 = vpop.f32.mrb[0].mxu0
        %419 = vmatprep.mubr.bf16.mxu0 0
        %420 = vmatmul.mubr.bf16.gmra.mrb[0].mxu0 %v328
        %v421 = vpop.f32.mrb[0].mxu0
        %v422 = vadd.f32 0.0, %v421
        %v423 = vpop.f32.mrb[0].mxu0
        %v424 = vpop.f32.mrb[0].mxu0
        %v425 = vadd.f32 0.0, %v424
        %v426 = vpop.f32.mrb[0].mxu0
        %427 = vdwg.mxu0
        %v428 = vadd.f32 %v295, %v414
        %v429 = vadd.f32 %v296, %v417
        %v430 = vadd.f32 %v297, %v422
        %v431 = vadd.f32 %v298, %v425
        %vm432 = vcmask 523264
        %433 = vst.msk [vmem:[#allocation2] sm:$0xff] %vm432, %v428
        %434 = vst.msk [vmem:[#allocation2 + $0x8] sm:$0xff] %vm432, %v429
        %435 = vst.msk [vmem:[#allocation2 + $0x10] sm:$0xff] %vm432, %v430
        %436 = vst.msk [vmem:[#allocation2 + $0x18] sm:$0xff] %vm432, %v431
        %p437 = scmp.eq.s32.totalorder %s16, 4
        // Predicated region
        $region86: #{encoder_forward.6} parent=76 // pred_check
          %p438 = pneg %p437
        $region87: #{encoder_forward.6} parent=76 // pred_check_branch
          %440 = sbr.rel (%p438) target = $region89
        $region88: #{encoder_forward.6} parent=76 // pred_region
          %v441 = vld [vmem:[#allocation2] sm:$0xff]
          %v442 = vld [vmem:[#allocation2 + $0x8] sm:$0xff]
          %v443 = vld [vmem:[#allocation2 + $0x10] sm:$0xff]
          %v444 = vld [vmem:[#allocation2 + $0x18] sm:$0xff]
          %v445 = vsel %vm432, %v441, 0.0
          %v446 = vsel %vm432, %v442, 0.0
          %v447 = vadd.f32 %v445, %v446
          %v448 = vsel %vm432, %v443, 0.0
          %v449 = vadd.f32 %v447, %v448
          %v450 = vsel %vm432, %v444, 0.0
          %v451 = vadd.f32 %v449, %v450
          %v452 = vrot.slane %v451, 4
          %v453 = vadd.f32 %v451, %v452
          %v454 = vrot.slane %v453, 2
          %v455 = vadd.f32 %v453, %v454
          %v456 = vrot.slane %v455, 1
          %v457 = vadd.f32 %v455, %v456
          %v458 = vrcp.pop 32.0
          %v459 = vmul.f32 %v457, %v458
          %v460 = vsub.f32 %v441, %v459
          %v461 = vsub.f32 %v442, %v459
          %v462 = vsub.f32 %v443, %v459
          %v463 = vsub.f32 %v444, %v459
          %v464 = vmul.f32 %v460, %v460
          %v465 = vmul.f32 %v461, %v461
          %v466 = vmul.f32 %v462, %v462
          %v467 = vmul.f32 %v463, %v463
          %v468 = vsel %vm432, %v464, 0.0
          %v469 = vsel %vm432, %v465, 0.0
          %v470 = vadd.f32 %v468, %v469
          %v471 = vsel %vm432, %v466, 0.0
          %v472 = vadd.f32 %v470, %v471
          %v473 = vsel %vm432, %v467, 0.0
          %v474 = vadd.f32 %v472, %v473
          %v475 = vrot.slane %v474, 4
          %v476 = vadd.f32 %v474, %v475
          %v477 = vrot.slane %v476, 2
          %v478 = vadd.f32 %v476, %v477
          %v479 = vrot.slane %v478, 1
          %v480 = vadd.f32 %v478, %v479
          %v481 = vmul.f32 %v480, %v458
          %v482 = vmax.f32 %v481, 0.0
          %v483 = vld [vmem:[%s3] sm:$0x1]
          %v485 = vlaneseq
          %v486 = vshrl.u32 %v485, 7
          %v487 = vsub.s32 0, %v486
          %v488 = vrot.slane %v483, %v487
          %v490 = vmul.f32 %v488, %v460
          %v491 = vmul.f32 %v488, %v461
          %v492 = vmul.f32 %v488, %v462
          %v493 = vmul.f32 %v488, %v463
          %v494 = vadd.f32 %v482, 1e-05
          %v495 = vrsqrt.pop %v494
          %v496 = vmul.f32 %v490, %v495
          %v497 = vmul.f32 %v491, %v495
          %v498 = vmul.f32 %v492, %v495
          %v499 = vmul.f32 %v493, %v495
          %v500 = vld [vmem:[%s4] sm:$0x1]
          %v502 = vlaneseq
          %v503 = vshrl.u32 %v502, 7
          %v504 = vsub.s32 0, %v503
          %v505 = vrot.slane %v500, %v504
          %v507 = vadd.f32 %v496, %v505
          %v508 = vadd.f32 %v497, %v505
          %v509 = vadd.f32 %v498, %v505
          %v510 = vadd.f32 %v499, %v505
          %v511 = vld [vmem:[%s2] sm:$0xff]
          %v512 = vld [vmem:[%s2 + $0x8] sm:$0xff]
          %v513 = vld [vmem:[%s2 + $0x10] sm:$0xff]
          %v514 = vld [vmem:[%s2 + $0x18] sm:$0xff]
          %v515 = vadd.f32 %v507, %v511
          %v516 = vadd.f32 %v508, %v512
          %v517 = vadd.f32 %v509, %v513
          %v518 = vadd.f32 %v510, %v514
          %v519 = vmax.f32 %v515, 0.0
          %v520 = vmax.f32 %v516, 0.0
          %v521 = vmax.f32 %v517, 0.0
          %v522 = vmax.f32 %v518, 0.0
          %523 = vst.msk [vmem:[%s5] sm:$0xff] %vm432, %v519
          %524 = vst.msk [vmem:[%s5 + $0x8] sm:$0xff] %vm432, %v520
          %525 = vst.msk [vmem:[%s5 + $0x10] sm:$0xff] %vm432, %v521
          %526 = vst.msk [vmem:[%s5 + $0x18] sm:$0xff] %vm432, %v522
        $region89: #{encoder_forward.6} parent=76 // pred_fallthru
          _
        // Predicated region
        $region90: #{encoder_forward.6} parent=76 // pred_check
          %p527 = pneg %p144
        $region91: #{encoder_forward.6} parent=76 // pred_check_branch
          %529 = sbr.rel (%p527) target = $region93
        $region92: #{encoder_forward.6} parent=76 // pred_region
          _
        $region93: #{encoder_forward.6} parent=76 // pred_fallthru
          _
        // Predicated region
        $region94: #{encoder_forward.6} parent=76 // pred_check
          %p530 = pneg %p144
        $region95: #{encoder_forward.6} parent=76 // pred_check_branch
          %532 = sbr.rel (%p530) target = $region97
        $region96: #{encoder_forward.6} parent=76 // pred_region
          _
        $region97: #{encoder_forward.6} parent=76 // pred_fallthru
          _
      $region77: #{encoder_forward.6} parent=5 // pred_fallthru
        _
      %p533 = scmp.le.s32.totalorder 2, %s11
      // Predicated region
      $region98: #{encoder_forward.6} parent=5 // pred_check
        %p534 = pneg %p533
      $region99: #{encoder_forward.6} parent=5 // pred_check_branch
        %536 = sbr.rel (%p534) target = $region101
      $region100: #{encoder_forward.6} parent=5 // pred_region
        %s537 = ssub.s32 %s11, 2
      $region101: #{encoder_forward.6} parent=5 // pred_fallthru
        _
    $region6: #{encoder_forward.6} parent=1 // loop_footer
      %s15 = sadd.s32 1, %s11
    $region7: #{encoder_forward.6} parent=1 // loop_footer_branch
      %10 = sbr.rel target = $region3
    $region8: #{encoder_forward.6} parent=1 // loop_exit
      _

// kernel: encoder_forward.7
$region0: #{encoder_forward.7}
  #allocation0 [shape = 'u32[]', space=smem, size = 0x4, offset = 0x4, fixed_abs, tag = 'smem constant byte address 0x4 - core index']
  #allocation1 [shape = 'u32[144,128]{1,0:T(1,128)}', space=vmem, size = 0x12000, scoped, tag = 'internal scratch']
  %s0 = inlined_call_operand.vmem [shape: f32[2,32], index: 0, kind: input, shape index: {}]
  %s1 = inlined_call_operand.vmem [shape: f32[32,64], index: 1, kind: input, shape index: {}]
  %s2 = inlined_call_operand.vmem [shape: bf16[64,32], index: 2, kind: input, shape index: {}]
  %s3 = inlined_call_operand.vmem [shape: f32[1,32], index: 3, kind: input, shape index: {}]
  %s4 = inlined_call_operand.vmem [shape: f32[1,32], index: 4, kind: input, shape index: {}]
  %s5 = inlined_call_operand.vmem [shape: f32[1,32], index: 5, kind: input, shape index: {}]
  %s6 = inlined_call_operand.hbm [shape: f32[2,32], index: 6, kind: output, shape index: {}]
  %s7 = sld [smem:[#allocation0]]
  $region34: #{encoder_forward.7} parent=0
    _
  %s9 = ssub.s32 1, %s7
  %s10 = scalar_select 0, %s9, %s7
  $region1: #{encoder_forward.7} parent=0
    #allocation2 [shape = 'u8[1024]{0}', space=vmem, size = 0x400, scoped, tag = 'output window, operand 0, single buffered']
    #allocation3 [shape = 's32[1]{0}', space=sflag, size = 0x4, scoped, tag = 'scoped memory for encoder_forward.7']
    %11 = vsyncpa [#allocation3], 0
    // Predicated region
    $region2: #{encoder_forward.7} parent=1 // pred_check
      _
    $region3: #{encoder_forward.7} parent=1 // pred_check_branch
      %13 = sbr.rel (0) target = $region5
    $region4: #{encoder_forward.7} parent=1 // pred_region
      _
    $region5: #{encoder_forward.7} parent=1 // pred_fallthru
      _
    // Predicated region
    $region6: #{encoder_forward.7} parent=1 // pred_check
      _
    $region7: #{encoder_forward.7} parent=1 // pred_check_branch
      %15 = sbr.rel (0) target = $region9
    $region8: #{encoder_forward.7} parent=1 // pred_region
      _
    $region9: #{encoder_forward.7} parent=1 // pred_fallthru
      _
    // Predicated region
    $region10: #{encoder_forward.7} parent=1 // pred_check
      _
    $region11: #{encoder_forward.7} parent=1 // pred_check_branch
      %17 = sbr.rel (0) target = $region13
    $region12: #{encoder_forward.7} parent=1 // pred_region
      _
    $region13: #{encoder_forward.7} parent=1 // pred_fallthru
      _
    // Predicated region
    $region14: #{encoder_forward.7} parent=1 // pred_check
      _
    $region15: #{encoder_forward.7} parent=1 // pred_check_branch
      %19 = sbr.rel (0) target = $region17
    $region16: #{encoder_forward.7} parent=1 // pred_region
      _
    $region17: #{encoder_forward.7} parent=1 // pred_fallthru
      _
    // Predicated region
    $region18: #{encoder_forward.7} parent=1 // pred_check
      _
    $region19: #{encoder_forward.7} parent=1 // pred_check_branch
      %21 = sbr.rel (0) target = $region21
    $region20: #{encoder_forward.7} parent=1 // pred_region
      _
    $region21: #{encoder_forward.7} parent=1 // pred_fallthru
      _
    // Predicated region
    $region22: #{encoder_forward.7} parent=1 // pred_check
      _
    $region23: #{encoder_forward.7} parent=1 // pred_check_branch
      %23 = sbr.rel (0) target = $region25
    $region24: #{encoder_forward.7} parent=1 // pred_region
      _
    $region25: #{encoder_forward.7} parent=1 // pred_fallthru
      _
    %v25 = vld [vmem:[%s0] sm:$0x3]
    %v26 = vld [vmem:[%s1] sm:$0xff]
    %v27 = vld [vmem:[%s1 + $0x8] sm:$0xff]
    %v28 = vld [vmem:[%s1 + $0x10] sm:$0xff]
    %v29 = vld [vmem:[%s1 + $0x18] sm:$0xff]
    %vm30 = vcmask 261120
    %v32 = vsel %vm30, %v25, 0
    %34 = vmatprep.subr.mxu0 0.0
    %35 = vmatpush1.msra.mxu0 %v26
    %36 = vmatprep.subr.mxu0 0.0
    %37 = vmatpush1.msra.mxu0 %v27
    %38 = vmatprep.subr.mxu0 0.0
    %39 = vmatpush1.msra.mxu0 %v28
    %40 = vmatprep.subr.mxu0 0.0
    %41 = vmatpush1.msra.mxu0 %v29
    %42 = vmatprep.subr.mxu0 0.0
    %43 = vmatpush1.msra.mxu0 0.0
    %44 = vmatprep.subr.mxu0 0.0
    %45 = vmatpush1.msra.mxu0 0.0
    %46 = vmatprep.subr.mxu0 0.0
    %47 = vmatpush1.msra.mxu0 0.0
    %48 = vmatprep.subr.mxu0 0.0
    %49 = vmatpush1.msra.mxu0 0.0
    %50 = vmatprep.subr.mxu0 0.0
    %51 = vmatpush1.msra.mxu0 0.0
    %52 = vmatprep.subr.mxu0 0.0
    %53 = vmatpush1.msra.mxu0 0.0
    %54 = vmatprep.subr.mxu0 0.0
    %55 = vmatpush1.msra.mxu0 0.0
    %56 = vmatprep.subr.mxu0 0.0
    %57 = vmatpush1.msra.mxu0 0.0
    %58 = vmatprep.subr.mxu0 0.0
    %59 = vmatpush1.msra.mxu0 0.0
    %60 = vmatprep.subr.mxu0 0.0
    %61 = vmatpush1.msra.mxu0 0.0
    %62 = vmatprep.subr.mxu0 0.0
    %63 = vmatpush1.msra.mxu0 0.0
    %64 = vmatprep.subr.mxu0 0.0
    %65 = vmatpush1.msra.mxu0 0.0
    %66 = vmatprep.subr.mxu0 0.0
    %67 = vmatpush1.msra.mxu0 0.0
    %68 = vmatprep.subr.mxu0 0.0
    %69 = vmatpush1.msra.mxu0 0.0
    %70 = vmatprep.subr.mxu0 0.0
    %71 = vmatpush1.msra.mxu0 0.0
    %72 = vmatprep.subr.mxu0 0.0
    %73 = vmatpush1.msra.mxu0 0.0
    %74 = vmatprep.subr.mxu0 0.0
    %75 = vmatpush1.msra.mxu0 0.0
    %76 = vmatprep.subr.mxu0 0.0
    %77 = vmatpush1.msra.mxu0 0.0
    %78 = vmatprep.subr.mxu0 0.0
    %79 = vmatpush1.msra.mxu0 0.0
    %80 = vmatprep.subr.mxu0 0.0
    %81 = vmatpush1.msra.mxu0 0.0
    %82 = vmatprep.subr.mxu0 0.0
    %83 = vmatpush1.msra.mxu0 0.0
    %84 = vmatprep.subr.mxu0 0.0
    %85 = vmatpush1.msra.mxu0 0.0
    %86 = vmatprep.subr.mxu0 0.0
    %87 = vmatpush1.msra.mxu0 0.0
    %88 = vmatprep.subr.mxu0 0.0
    %89 = vmatpush1.msra.mxu0 0.0
    %90 = vmatprep.subr.mxu0 0.0
    %91 = vmatpush1.msra.mxu0 0.0
    %92 = vmatprep.subr.mxu0 0.0
    %93 = vmatpush1.msra.mxu0 0.0
    %94 = vmatprep.subr.mxu0 0.0
    %95 = vmatpush1.msra.mxu0 0.0
    %96 = vmatprep.subr.mxu0 0.0
    %97 = vmatpush1.msra.mxu0 0.0
    %98 = vmatprep.mubr.f32.mxu0 0.0
    %99 = vmatmul.mubr.f32.gmra.mrb[0].mxu0 %v32
    %v100 = vpop.f32.mrb[0].mxu0
    %v101 = vadd.f32 0.0, %v100
    %v102 = vpop.f32.mrb[0].mxu0
    %103 = vdwg.mxu0
    %v104 = vpack.c.bf16 %v101, %v101
    %v105 = vld [vmem:[%s2] sm:$0xf]
    %v106 = vld [vmem:[%s2 + $0x4] sm:$0xf]
    %v107 = vld [vmem:[%s2 + $0x8] sm:$0xf]
    %v108 = vld [vmem:[%s2 + $0xc] sm:$0xf]
    %v109 = vld [vmem:[%s2 + $0x10] sm:$0xf]
    %v110 = vld [vmem:[%s2 + $0x14] sm:$0xf]
    %v111 = vld [vmem:[%s2 + $0x18] sm:$0xf]
    %v112 = vld [vmem:[%s2 + $0x1c] sm:$0xf]
    %v113 = vld [vmem:[%s3] sm:$0x1]
    %v115 = vlaneseq
    %v116 = vshrl.u32 %v115, 7
    %v117 = vsub.s32 0, %v116
    %v118 = vrot.slane %v113, %v117
    %v128 = vunpack.c.l.b16 %v105
    %v129 = vunpack.c.l.b16 %v106
    %v130 = vunpack.c.l.b16 %v107
    %v131 = vunpack.c.l.b16 %v108
    %v132 = vunpack.c.l.b16 %v109
    %v133 = vunpack.c.l.b16 %v110
    %v134 = vunpack.c.l.b16 %v111
    %v135 = vunpack.c.l.b16 %v112
    %v136 = vpack.c.b16 %v129, %v128
    %v137 = vpack.c.b16 %v131, %v130
    %v138 = vpack.c.b16 %v133, %v132
    %v139 = vpack.c.b16 %v135, %v134
    %vm144 = vcmask 523264
    %v146 = vsel %vm144, %v104, 0
    %148 = vmatprep.subr.bf16.mxu0 0
    %149 = vmatpush1.bf16.msra.mxu0 %v136
    %150 = vmatprep.subr.bf16.mxu0 0
    %151 = vmatpush1.bf16.msra.mxu0 %v137
    %152 = vmatprep.subr.bf16.mxu0 0
    %153 = vmatpush1.bf16.msra.mxu0 %v138
    %154 = vmatprep.subr.bf16.mxu0 0
    %155 = vmatpush1.bf16.msra.mxu0 %v139
    %156 = vmatprep.subr.bf16.mxu0 0
    %157 = vmatpush1.bf16.msra.mxu0 0
    %158 = vmatprep.subr.bf16.mxu0 0
    %159 = vmatpush1.bf16.msra.mxu0 0
    %160 = vmatprep.subr.bf16.mxu0 0
    %161 = vmatpush1.bf16.msra.mxu0 0
    %162 = vmatprep.subr.bf16.mxu0 0
    %163 = vmatpush1.bf16.msra.mxu0 0
    %164 = vmatprep.subr.bf16.mxu0 0
    %165 = vmatpush1.bf16.msra.mxu0 0
    %166 = vmatprep.subr.bf16.mxu0 0
    %167 = vmatpush1.bf16.msra.mxu0 0
    %168 = vmatprep.subr.bf16.mxu0 0
    %169 = vmatpush1.bf16.msra.mxu0 0
    %170 = vmatprep.subr.bf16.mxu0 0
    %171 = vmatpush1.bf16.msra.mxu0 0
    %172 = vmatprep.subr.bf16.mxu0 0
    %173 = vmatpush1.bf16.msra.mxu0 0
    %174 = vmatprep.subr.bf16.mxu0 0
    %175 = vmatpush1.bf16.msra.mxu0 0
    %176 = vmatprep.subr.bf16.mxu0 0
    %177 = vmatpush1.bf16.msra.mxu0 0
    %178 = vmatprep.subr.bf16.mxu0 0
    %179 = vmatpush1.bf16.msra.mxu0 0
    %180 = vmatprep.mubr.bf16.mxu0 0
    %181 = vmatmul.mubr.bf16.gmra.mrb[0].mxu0 %v146
    %v182 = vpop.f32.mrb[0].mxu0
    %v183 = vadd.f32 %v118, %v182
    %v184 = vpop.f32.mrb[0].mxu0
    %v185 = vpop.f32.mrb[0].mxu0
    %v186 = vpop.f32.mrb[0].mxu0
    %187 = vdwg.mxu0
    %vm188 = vcmask 254976
    %v189 = vsel %vm188, %v183, 0.0
    %v190 = vrot.slane %v189, 4
    %v191 = vadd.f32 %v189, %v190
    %v192 = vrot.slane %v191, 2
    %v193 = vadd.f32 %v191, %v192
    %v194 = vrot.slane %v193, 1
    %v195 = vadd.f32 %v193, %v194
    %v196 = vrcp.pop 2.0
    %v197 = vmul.f32 %v195, %v196
    %v198 = vsub.f32 %v183, %v197
    %v199 = vmul.f32 %v198, %v198
    %v200 = vsel %vm188, %v199, 0.0
    %v201 = vrot.slane %v200, 4
    %v202 = vadd.f32 %v200, %v201
    %v203 = vrot.slane %v202, 2
    %v204 = vadd.f32 %v202, %v203
    %v205 = vrot.slane %v204, 1
    %v206 = vadd.f32 %v204, %v205
    %v207 = vmul.f32 %v206, %v196
    %v208 = vmax.f32 %v207, 0.0
    %v209 = vld [vmem:[%s4] sm:$0x1]
    %v211 = vlaneseq
    %v212 = vshrl.u32 %v211, 7
    %v213 = vsub.s32 0, %v212
    %v214 = vrot.slane %v209, %v213
    %v216 = vmul.f32 %v214, %v198
    %v217 = vadd.f32 %v208, 1e-05
    %v218 = vrsqrt.pop %v217
    %v219 = vmul.f32 %v216, %v218
    %v220 = vld [vmem:[%s5] sm:$0x1]
    %v222 = vlaneseq
    %v223 = vshrl.u32 %v222, 7
    %v224 = vsub.s32 0, %v223
    %v225 = vrot.slane %v220, %v224
    %v227 = vadd.f32 %v219, %v225
    %228 = vst.msk [vmem:[#allocation2] sm:$0x3] %vm188, %v227
    // Predicated region
    $region26: #{encoder_forward.7} parent=1 // pred_check
      _
    $region27: #{encoder_forward.7} parent=1 // pred_check_branch
      %230 = sbr.rel (0) target = $region29
    $region28: #{encoder_forward.7} parent=1 // pred_region
      %s232 = ssub.s32 32, 32
      %233 = vsyncadd [#allocation3], %s232
      %s235 = sshll.u32 [#allocation2], 4
      %s236 = int_to_ptr.vmem [resolvable:$true] %s235
      %238 = dma.vmem_to_hbm [thread:$0]  %s236, 32, %s6, [#allocation3]
    $region29: #{encoder_forward.7} parent=1 // pred_fallthru
      _
    // Predicated region
    $region30: #{encoder_forward.7} parent=1 // pred_check
      _
    $region31: #{encoder_forward.7} parent=1 // pred_check_branch
      %240 = sbr.rel (0) target = $region33
    $region32: #{encoder_forward.7} parent=1 // pred_region
      %241 = dma.done [#allocation3], 32
    $region33: #{encoder_forward.7} parent=1 // pred_fallthru
      _
    %242 = vsyncpa [#allocation3], 1

</llo_original>
